<compile_context>
chip_gen: v7x
topology: tpu7x:2x2x1
jax: 0.10.0
libtpu: 0.0.40
codegen_flags: <defaults>
</compile_context>

<pallas_src>
import numpy as np

import jax
import jax.numpy as jnp
from jax.experimental import pallas as pl
from jax.experimental.pallas import tpu as pltpu


def _round_up(v, m):
    return (v + m - 1) // m * m


def conv_bn_relu(x_nchw, weight, gamma, beta, *, padding=1, stride=1,
                 relu6=False, eps=1e-5, mxu_dtype=jnp.bfloat16):
    """Fused Conv2d(bias=False) + BatchNorm2d(training mode) + ReLU / ReLU6.

    x_nchw : (N, Cin, H, W)       float32
    weight : (Cout, Cin, KH, KW)  PyTorch conv weight layout
    gamma, beta : (Cout,)
    returns: (N, Cout, H_out, W_out) float32
    """
    if stride != 1:
        raise NotImplementedError("stride > 1 not implemented")  # TODO(synk)
    N, Cin, H, W = x_nchw.shape
    Cout, Cin_w, KH, KW = weight.shape
    if Cin_w != Cin:
        raise NotImplementedError("groups > 1 not implemented")  # TODO(synk)

    Hp, Wp = H + 2 * padding, W + 2 * padding
    H_out, W_out = Hp - KH + 1, Wp - KW + 1
    m_valid = N * H_out * W_out                      # positions entering BN stats
    inv_m = 1.0 / float(m_valid)

    # Flat-layout bookkeeping: images are stacked along H (each already padded), then
    # (row, col) is flattened so output position (n, h, w) lives at
    #   p = (n*Hp + h)*Wp + w     and tap (kh, kw) reads flat index p + kh*Wp + kw.
    L_real = N * Hp * Wp                             # real flattened length
    p_max = ((N - 1) * Hp + (H_out - 1)) * Wp + (W_out - 1)
    off_max = (KH - 1) * Wp + (KW - 1)
    Lc = _round_up(p_max + 1, 128)                   # compute/output slab width (lane-dense)
    Lpad = _round_up(max(L_real, Lc + off_max), 128)  # input slab width (covers all tap reads)

    # ---- wrapper-side layout prep (O(input size); no im2col duplication) ----------
    xp = jnp.pad(x_nchw, ((0, 0), (0, 0), (padding, padding), (padding, padding)))
    x_flat = jnp.transpose(xp, (1, 0, 2, 3)).reshape(Cin, L_real)      # channel-major
    x_flat = jnp.pad(x_flat, ((0, 0), (0, Lpad - L_real))).astype(mxu_dtype)

    # Per-tap weights, tap index t = kh*KW + kw   -> (KH*KW, Cout, Cin)
    w_taps = jnp.transpose(weight, (2, 3, 0, 1)).reshape(KH * KW, Cout, Cin)
    w_taps = w_taps.astype(mxu_dtype)

    # BN affine packed into one operand: [:, 0] = gamma, [:, 1] = beta
    gb = jnp.stack([gamma, beta], axis=1).astype(jnp.float32)           # (Cout, 2)

    # Validity mask over the compute slab (host-side constant): a position p is a real
    # conv output iff it is inside the stacked region, its column < W_out and its
    # row-within-image < H_out.
    p_idx = np.arange(Lc)
    valid = (p_idx < L_real) & (p_idx % Wp < W_out) & ((p_idx // Wp) % Hp < H_out)
    assert int(valid.sum()) == m_valid
    mask = jnp.asarray(valid.reshape(1, Lc), jnp.float32)

    # ---- fused kernel ---------------------------------------------------------------
    def kernel(x_ref, w_ref, gb_ref, mask_ref, o_ref):
        # x_ref:    (Cin, Lpad)        bf16/f32  flat padded input (lane-dense)
        # w_ref:    (KH*KW, Cout, Cin) bf16/f32  per-tap conv weights
        # gb_ref:   (Cout, 2)          f32       [gamma | beta]
        # mask_ref: (1, Lc)            f32       1.0 on valid output positions
        # o_ref:    (Cout, Lc)         f32       fused output slab (lane-dense)

        # Convolution via in-kernel im2col: each tap is a static lane-window of the
        # flat input; KH*KW small matmuls accumulate into an f32 register accumulator.
        acc = jnp.zeros((Cout, Lc), jnp.float32)
        for kh in range(KH):
            for kw in range(KW):
                off = kh * Wp + kw
                xs = x_ref[:, off:off + Lc]                     # (Cin, Lc)
                w_t = w_ref[kh * KW + kw]                       # (Cout, Cin)
                acc = acc + jnp.dot(w_t, xs, preferred_element_type=jnp.float32)

        # BatchNorm2d (training): masked batch statistics over the m_valid real
        # positions; centered variance (no E[x^2]-E[x]^2 cancellation), all f32.
        msk = mask_ref[...]                                     # (1, Lc)
        mean = jnp.sum(acc * msk, axis=1, keepdims=True) * inv_m          # (Cout, 1)
        cen = (acc - mean) * msk
        var = jnp.sum(cen * cen, axis=1, keepdims=True) * inv_m           # (Cout, 1)

        g = gb_ref[:, 0:1]
        b = gb_ref[:, 1:2]
        scale = g * jax.lax.rsqrt(var + eps)                    # (Cout, 1)
        shift = b - mean * scale                                # (Cout, 1)
        y = jnp.maximum(acc * scale + shift, 0.0)               # ReLU
        if relu6:
            y = jnp.minimum(y, 6.0)                             # ReLU6 variant
        o_ref[...] = y

    vmem = pl.BlockSpec(memory_space=pltpu.MemorySpace.VMEM)
    out_slab = pl.pallas_call(
        kernel,
        out_shape=jax.ShapeDtypeStruct((Cout, Lc), jnp.float32),
        in_specs=[vmem, vmem, vmem, vmem],
        out_specs=vmem,
    )(x_flat, w_taps, gb, mask)

    # ---- un-flatten back to NCHW (layout plumbing only) -----------------------------
    # TODO(synk): skip this transpose when the consumer is the next fused conv layer.
    if Lc < L_real:
        out_slab = jnp.pad(out_slab, ((0, 0), (0, L_real - Lc)))
    out = out_slab[:, :L_real].reshape(Cout, N, Hp, Wp)[:, :, :H_out, :W_out]
    return jnp.transpose(out, (1, 0, 2, 3))


def _reference(x, weight, gamma, beta, padding, relu6=False, eps=1e-5,
               mxu_dtype=jnp.bfloat16):
    """Plain-JAX reference (same operand rounding as the kernel, f32 accumulation)."""
    xr = x.astype(mxu_dtype).astype(jnp.float32)
    wr = weight.astype(mxu_dtype).astype(jnp.float32)
    out = jax.lax.conv_general_dilated(
        xr, wr, window_strides=(1, 1),
        padding=[(padding, padding), (padding, padding)],
        dimension_numbers=("NCHW", "OIHW", "NCHW"))
    mean = jnp.mean(out, axis=(0, 2, 3), keepdims=True)
    var = jnp.mean((out - mean) ** 2, axis=(0, 2, 3), keepdims=True)
    y = (out - mean) * jax.lax.rsqrt(var + eps)
    y = y * gamma.reshape(1, -1, 1, 1) + beta.reshape(1, -1, 1, 1)
    y = jnp.maximum(y, 0.0)
    return jnp.minimum(y, 6.0) if relu6 else y


if __name__ == "__main__":
    # Small shapes consistent with _ConvBNReLU(in=4, out=8, kernel=3, stride=1, pad=1)
    N, Cin, H, W = 2, 4, 16, 16
    Cout, KH, KW = 8, 3, 3

    key = jax.random.PRNGKey(0)
    kx, kw_, kg, kb = jax.random.split(key, 4)
    x = jax.random.normal(kx, (N, Cin, H, W), dtype=jnp.float32)

    # Kaiming-uniform-ish conv init; non-trivial BN affine to exercise gamma/beta.
    fan_in = Cin * KH * KW
    bound = 1.0 / (fan_in ** 0.5)
    weight = jax.random.uniform(kw_, (Cout, Cin, KH, KW),
                                minval=-bound, maxval=bound, dtype=jnp.float32)
    gamma = jax.random.uniform(kg, (Cout,), minval=0.5, maxval=1.5, dtype=jnp.float32)
    beta = 0.1 * jax.random.normal(kb, (Cout,), dtype=jnp.float32)

    # Default module config: ReLU (relu6=False)
    out = conv_bn_relu(x, weight, gamma, beta, padding=1)
    jax.block_until_ready(out)
    assert out.shape == (N, Cout, H, W), out.shape
    ref = _reference(x, weight, gamma, beta, 1)
    err = float(jnp.max(jnp.abs(out - ref)))
    assert err < 1e-3, f"max abs err vs reference (relu): {err}"

    # ReLU6 variant (torchvision-style _ConvBNReLU)
    out6 = conv_bn_relu(x, weight, gamma, beta, padding=1, relu6=True)
    jax.block_until_ready(out6)
    ref6 = _reference(x, weight, gamma, beta, 1, relu6=True)
    err6 = float(jnp.max(jnp.abs(out6 - ref6)))
    assert err6 < 1e-3, f"max abs err vs reference (relu6): {err6}"

    print("KERNEL_OK")
</pallas_src>

<mosaic_0001>
module attributes {stable_mosaic.version = 11 : i64} {
  func.func @kernel(%arg0: memref<4x768xbf16, #tpu.memory_space<vmem>>, %arg1: memref<9x8x4xbf16, #tpu.memory_space<vmem>>, %arg2: memref<8x2xf32, #tpu.memory_space<vmem>>, %arg3: memref<1x640xf32, #tpu.memory_space<vmem>>, %arg4: memref<8x640xf32, #tpu.memory_space<vmem>>) attributes {dimension_semantics = [], scalar_prefetch = 0 : i64, scratch_operands = 0 : i64, tpu.core_type = #tpu.core_type<tc>} {
    %cst = arith.constant 0.000000e+00 : f32
    %0 = vector.broadcast %cst : f32 to vector<8x640xf32>
    %c0 = arith.constant 0 : index
    %c0_0 = arith.constant 0 : index
    %1 = vector.load %arg0[%c0, %c0_0] : memref<4x768xbf16, #tpu.memory_space<vmem>>, vector<4x640xbf16>
    %c0_1 = arith.constant 0 : index
    %c0_2 = arith.constant 0 : index
    %c0_3 = arith.constant 0 : index
    %2 = vector.load %arg1[%c0_1, %c0_2, %c0_3] : memref<9x8x4xbf16, #tpu.memory_space<vmem>>, vector<1x8x4xbf16>
    %3 = vector.shape_cast %2 : vector<1x8x4xbf16> to vector<8x4xbf16>
    %cst_4 = arith.constant dense<0.000000e+00> : vector<8x640xf32>
    %4 = tpu.matmul %3, %1, %cst_4 {dimension_numbers = #tpu.dot_dimension_numbers<[1], [0], [0], [1], [0, 0, 1, 1], [], []>} : vector<8x4xbf16>, vector<4x640xbf16>, vector<8x640xf32> -> vector<8x640xf32>
    %5 = arith.addf %0, %4 : vector<8x640xf32>
    %c0_5 = arith.constant 0 : index
    %c1 = arith.constant 1 : index
    %6 = vector.load %arg0[%c0_5, %c1] : memref<4x768xbf16, #tpu.memory_space<vmem>>, vector<4x640xbf16>
    %c1_6 = arith.constant 1 : index
    %c0_7 = arith.constant 0 : index
    %c0_8 = arith.constant 0 : index
    %7 = vector.load %arg1[%c1_6, %c0_7, %c0_8] : memref<9x8x4xbf16, #tpu.memory_space<vmem>>, vector<1x8x4xbf16>
    %8 = vector.shape_cast %7 : vector<1x8x4xbf16> to vector<8x4xbf16>
    %cst_9 = arith.constant dense<0.000000e+00> : vector<8x640xf32>
    %9 = tpu.matmul %8, %6, %cst_9 {dimension_numbers = #tpu.dot_dimension_numbers<[1], [0], [0], [1], [0, 0, 1, 1], [], []>} : vector<8x4xbf16>, vector<4x640xbf16>, vector<8x640xf32> -> vector<8x640xf32>
    %10 = arith.addf %5, %9 : vector<8x640xf32>
    %c0_10 = arith.constant 0 : index
    %c2 = arith.constant 2 : index
    %11 = vector.load %arg0[%c0_10, %c2] : memref<4x768xbf16, #tpu.memory_space<vmem>>, vector<4x640xbf16>
    %c2_11 = arith.constant 2 : index
    %c0_12 = arith.constant 0 : index
    %c0_13 = arith.constant 0 : index
    %12 = vector.load %arg1[%c2_11, %c0_12, %c0_13] : memref<9x8x4xbf16, #tpu.memory_space<vmem>>, vector<1x8x4xbf16>
    %13 = vector.shape_cast %12 : vector<1x8x4xbf16> to vector<8x4xbf16>
    %cst_14 = arith.constant dense<0.000000e+00> : vector<8x640xf32>
    %14 = tpu.matmul %13, %11, %cst_14 {dimension_numbers = #tpu.dot_dimension_numbers<[1], [0], [0], [1], [0, 0, 1, 1], [], []>} : vector<8x4xbf16>, vector<4x640xbf16>, vector<8x640xf32> -> vector<8x640xf32>
    %15 = arith.addf %10, %14 : vector<8x640xf32>
    %c0_15 = arith.constant 0 : index
    %c18 = arith.constant 18 : index
    %16 = vector.load %arg0[%c0_15, %c18] : memref<4x768xbf16, #tpu.memory_space<vmem>>, vector<4x640xbf16>
    %c3 = arith.constant 3 : index
    %c0_16 = arith.constant 0 : index
    %c0_17 = arith.constant 0 : index
    %17 = vector.load %arg1[%c3, %c0_16, %c0_17] : memref<9x8x4xbf16, #tpu.memory_space<vmem>>, vector<1x8x4xbf16>
    %18 = vector.shape_cast %17 : vector<1x8x4xbf16> to vector<8x4xbf16>
    %cst_18 = arith.constant dense<0.000000e+00> : vector<8x640xf32>
    %19 = tpu.matmul %18, %16, %cst_18 {dimension_numbers = #tpu.dot_dimension_numbers<[1], [0], [0], [1], [0, 0, 1, 1], [], []>} : vector<8x4xbf16>, vector<4x640xbf16>, vector<8x640xf32> -> vector<8x640xf32>
    %20 = arith.addf %15, %19 : vector<8x640xf32>
    %c0_19 = arith.constant 0 : index
    %c19 = arith.constant 19 : index
    %21 = vector.load %arg0[%c0_19, %c19] : memref<4x768xbf16, #tpu.memory_space<vmem>>, vector<4x640xbf16>
    %c4 = arith.constant 4 : index
    %c0_20 = arith.constant 0 : index
    %c0_21 = arith.constant 0 : index
    %22 = vector.load %arg1[%c4, %c0_20, %c0_21] : memref<9x8x4xbf16, #tpu.memory_space<vmem>>, vector<1x8x4xbf16>
    %23 = vector.shape_cast %22 : vector<1x8x4xbf16> to vector<8x4xbf16>
    %cst_22 = arith.constant dense<0.000000e+00> : vector<8x640xf32>
    %24 = tpu.matmul %23, %21, %cst_22 {dimension_numbers = #tpu.dot_dimension_numbers<[1], [0], [0], [1], [0, 0, 1, 1], [], []>} : vector<8x4xbf16>, vector<4x640xbf16>, vector<8x640xf32> -> vector<8x640xf32>
    %25 = arith.addf %20, %24 : vector<8x640xf32>
    %c0_23 = arith.constant 0 : index
    %c20 = arith.constant 20 : index
    %26 = vector.load %arg0[%c0_23, %c20] : memref<4x768xbf16, #tpu.memory_space<vmem>>, vector<4x640xbf16>
    %c5 = arith.constant 5 : index
    %c0_24 = arith.constant 0 : index
    %c0_25 = arith.constant 0 : index
    %27 = vector.load %arg1[%c5, %c0_24, %c0_25] : memref<9x8x4xbf16, #tpu.memory_space<vmem>>, vector<1x8x4xbf16>
    %28 = vector.shape_cast %27 : vector<1x8x4xbf16> to vector<8x4xbf16>
    %cst_26 = arith.constant dense<0.000000e+00> : vector<8x640xf32>
    %29 = tpu.matmul %28, %26, %cst_26 {dimension_numbers = #tpu.dot_dimension_numbers<[1], [0], [0], [1], [0, 0, 1, 1], [], []>} : vector<8x4xbf16>, vector<4x640xbf16>, vector<8x640xf32> -> vector<8x640xf32>
    %30 = arith.addf %25, %29 : vector<8x640xf32>
    %c0_27 = arith.constant 0 : index
    %c36 = arith.constant 36 : index
    %31 = vector.load %arg0[%c0_27, %c36] : memref<4x768xbf16, #tpu.memory_space<vmem>>, vector<4x640xbf16>
    %c6 = arith.constant 6 : index
    %c0_28 = arith.constant 0 : index
    %c0_29 = arith.constant 0 : index
    %32 = vector.load %arg1[%c6, %c0_28, %c0_29] : memref<9x8x4xbf16, #tpu.memory_space<vmem>>, vector<1x8x4xbf16>
    %33 = vector.shape_cast %32 : vector<1x8x4xbf16> to vector<8x4xbf16>
    %cst_30 = arith.constant dense<0.000000e+00> : vector<8x640xf32>
    %34 = tpu.matmul %33, %31, %cst_30 {dimension_numbers = #tpu.dot_dimension_numbers<[1], [0], [0], [1], [0, 0, 1, 1], [], []>} : vector<8x4xbf16>, vector<4x640xbf16>, vector<8x640xf32> -> vector<8x640xf32>
    %35 = arith.addf %30, %34 : vector<8x640xf32>
    %c0_31 = arith.constant 0 : index
    %c37 = arith.constant 37 : index
    %36 = vector.load %arg0[%c0_31, %c37] : memref<4x768xbf16, #tpu.memory_space<vmem>>, vector<4x640xbf16>
    %c7 = arith.constant 7 : index
    %c0_32 = arith.constant 0 : index
    %c0_33 = arith.constant 0 : index
    %37 = vector.load %arg1[%c7, %c0_32, %c0_33] : memref<9x8x4xbf16, #tpu.memory_space<vmem>>, vector<1x8x4xbf16>
    %38 = vector.shape_cast %37 : vector<1x8x4xbf16> to vector<8x4xbf16>
    %cst_34 = arith.constant dense<0.000000e+00> : vector<8x640xf32>
    %39 = tpu.matmul %38, %36, %cst_34 {dimension_numbers = #tpu.dot_dimension_numbers<[1], [0], [0], [1], [0, 0, 1, 1], [], []>} : vector<8x4xbf16>, vector<4x640xbf16>, vector<8x640xf32> -> vector<8x640xf32>
    %40 = arith.addf %35, %39 : vector<8x640xf32>
    %c0_35 = arith.constant 0 : index
    %c38 = arith.constant 38 : index
    %41 = vector.load %arg0[%c0_35, %c38] : memref<4x768xbf16, #tpu.memory_space<vmem>>, vector<4x640xbf16>
    %c8 = arith.constant 8 : index
    %c0_36 = arith.constant 0 : index
    %c0_37 = arith.constant 0 : index
    %42 = vector.load %arg1[%c8, %c0_36, %c0_37] : memref<9x8x4xbf16, #tpu.memory_space<vmem>>, vector<1x8x4xbf16>
    %43 = vector.shape_cast %42 : vector<1x8x4xbf16> to vector<8x4xbf16>
    %cst_38 = arith.constant dense<0.000000e+00> : vector<8x640xf32>
    %44 = tpu.matmul %43, %41, %cst_38 {dimension_numbers = #tpu.dot_dimension_numbers<[1], [0], [0], [1], [0, 0, 1, 1], [], []>} : vector<8x4xbf16>, vector<4x640xbf16>, vector<8x640xf32> -> vector<8x640xf32>
    %45 = arith.addf %40, %44 : vector<8x640xf32>
    %c0_39 = arith.constant 0 : index
    %c0_40 = arith.constant 0 : index
    %46 = vector.load %arg3[%c0_39, %c0_40] : memref<1x640xf32, #tpu.memory_space<vmem>>, vector<1x640xf32>
    %47 = vector.broadcast %46 : vector<1x640xf32> to vector<8x640xf32>
    %48 = arith.mulf %45, %47 : vector<8x640xf32>
    %cst_41 = arith.constant dense<0.000000e+00> : vector<8xf32>
    %49 = vector.multi_reduction <add>, %48, %cst_41 [1] : vector<8x640xf32> to vector<8xf32>
    %50 = vector.shape_cast %49 : vector<8xf32> to vector<8x1xf32>
    %cst_42 = arith.constant 0.001953125 : f32
    %51 = vector.broadcast %cst_42 : f32 to vector<8x1xf32>
    %52 = arith.mulf %50, %51 : vector<8x1xf32>
    %53 = vector.broadcast %52 : vector<8x1xf32> to vector<8x640xf32>
    %54 = arith.subf %45, %53 : vector<8x640xf32>
    %55 = vector.broadcast %46 : vector<1x640xf32> to vector<8x640xf32>
    %56 = arith.mulf %54, %55 : vector<8x640xf32>
    %57 = arith.mulf %56, %56 : vector<8x640xf32>
    %cst_43 = arith.constant dense<0.000000e+00> : vector<8xf32>
    %58 = vector.multi_reduction <add>, %57, %cst_43 [1] : vector<8x640xf32> to vector<8xf32>
    %59 = vector.shape_cast %58 : vector<8xf32> to vector<8x1xf32>
    %cst_44 = arith.constant 0.001953125 : f32
    %60 = vector.broadcast %cst_44 : f32 to vector<8x1xf32>
    %61 = arith.mulf %59, %60 : vector<8x1xf32>
    %c0_45 = arith.constant 0 : index
    %c0_46 = arith.constant 0 : index
    %62 = vector.load %arg2[%c0_45, %c0_46] : memref<8x2xf32, #tpu.memory_space<vmem>>, vector<8x1xf32>
    %c0_47 = arith.constant 0 : index
    %c1_48 = arith.constant 1 : index
    %63 = vector.load %arg2[%c0_47, %c1_48] : memref<8x2xf32, #tpu.memory_space<vmem>>, vector<8x1xf32>
    %cst_49 = arith.constant 9.99999974E-6 : f32
    %64 = vector.broadcast %cst_49 : f32 to vector<8x1xf32>
    %65 = arith.addf %61, %64 : vector<8x1xf32>
    %66 = math.rsqrt %65 : vector<8x1xf32>
    %67 = arith.mulf %62, %66 : vector<8x1xf32>
    %68 = arith.mulf %52, %67 : vector<8x1xf32>
    %69 = arith.subf %63, %68 : vector<8x1xf32>
    %70 = vector.broadcast %67 : vector<8x1xf32> to vector<8x640xf32>
    %71 = arith.mulf %45, %70 : vector<8x640xf32>
    %72 = vector.broadcast %69 : vector<8x1xf32> to vector<8x640xf32>
    %73 = arith.addf %71, %72 : vector<8x640xf32>
    %cst_50 = arith.constant 0.000000e+00 : f32
    %74 = vector.broadcast %cst_50 : f32 to vector<8x640xf32>
    %75 = arith.maximumf %73, %74 : vector<8x640xf32>
    %c0_51 = arith.constant 0 : index
    %c0_52 = arith.constant 0 : index
    %76 = vector.load %arg4[%c0_51, %c0_52] : memref<8x640xf32, #tpu.memory_space<vmem>>, vector<8x640xf32>
    tpu.vector_store %arg4[%c0_51, %c0_52], %75 {strides = array<i32>} : memref<8x640xf32, #tpu.memory_space<vmem>>, vector<8x640xf32>,
    return
  }
}

</mosaic_0001>

<llo_original>
// kernel: tpu_custom_call.1
$region0: #{tpu_custom_call.1}
  #allocation0 [shape = 'u32[]', space=smem, size = 0x4, offset = 0x4, fixed_abs, tag = 'smem constant byte address 0x4 - core index']
  #allocation1 [shape = 'u32[144,128]{1,0:T(1,128)}', space=vmem, size = 0x12000, scoped, tag = 'internal scratch']
  %s0 = inlined_call_operand.vmem [shape: bf16[4,768], index: 0, kind: input, shape index: {}]
  %s1 = inlined_call_operand.vmem [shape: bf16[9,8,4], index: 1, kind: input, shape index: {}]
  %s2 = inlined_call_operand.vmem [shape: f32[8,2], index: 2, kind: input, shape index: {}]
  %s3 = inlined_call_operand.vmem [shape: f32[1,640], index: 3, kind: input, shape index: {}]
  %s4 = inlined_call_operand.hbm [shape: f32[8,640], index: 4, kind: output, shape index: {}]
  %s5 = sld [smem:[#allocation0]]
  $region26: #{tpu_custom_call.1} parent=0
    _
  %s7 = ssub.s32 1, %s5
  %s8 = scalar_select 0, %s7, %s5
  $region1: #{tpu_custom_call.1} parent=0
    #allocation2 [shape = 'u8[20480]{0}', space=vmem, size = 0x5000, scoped, tag = 'output window, operand 0, single buffered']
    #allocation3 [shape = 's32[1]{0}', space=sflag, size = 0x4, scoped, tag = 'scoped memory for tpu_custom_call.1']
    %9 = vsyncpa [#allocation3], 0
    // Predicated region
    $region2: #{tpu_custom_call.1} parent=1 // pred_check
      _
    $region3: #{tpu_custom_call.1} parent=1 // pred_check_branch
      %11 = sbr.rel (0) target = $region5
    $region4: #{tpu_custom_call.1} parent=1 // pred_region
      _
    $region5: #{tpu_custom_call.1} parent=1 // pred_fallthru
      _
    // Predicated region
    $region6: #{tpu_custom_call.1} parent=1 // pred_check
      _
    $region7: #{tpu_custom_call.1} parent=1 // pred_check_branch
      %13 = sbr.rel (0) target = $region9
    $region8: #{tpu_custom_call.1} parent=1 // pred_region
      _
    $region9: #{tpu_custom_call.1} parent=1 // pred_fallthru
      _
    // Predicated region
    $region10: #{tpu_custom_call.1} parent=1 // pred_check
      _
    $region11: #{tpu_custom_call.1} parent=1 // pred_check_branch
      %15 = sbr.rel (0) target = $region13
    $region12: #{tpu_custom_call.1} parent=1 // pred_region
      _
    $region13: #{tpu_custom_call.1} parent=1 // pred_fallthru
      _
    // Predicated region
    $region14: #{tpu_custom_call.1} parent=1 // pred_check
      _
    $region15: #{tpu_custom_call.1} parent=1 // pred_check_branch
      %17 = sbr.rel (0) target = $region17
    $region16: #{tpu_custom_call.1} parent=1 // pred_region
      _
    $region17: #{tpu_custom_call.1} parent=1 // pred_fallthru
      _
    %v19 = vld [vmem:[%s0] sm:$0xff]
    %v20 = vld [vmem:[%s0 + $0x8] sm:$0x3]
    %v21 = vld [vmem:[%s1] sm:$0xf]
    %v22 = vld [vmem:[%s0] sm:$0xff]
    %v23 = vld [vmem:[%s0 + $0x8] sm:$0xf]
    %s24 = scalar_lea.vmem %s1, 4
    %v25 = vld [vmem:[%s24] sm:$0xf]
    %v28 = vcombine.high %v22, %v22
    %v30 = vunpack.c.l.s4 1983009808
    %v31 = vunpack.c.0.s8 %v30
    %v32 = vlaneseq
    %v33 = vshrl.u32 %v32, 7
    %v34 = vsub.s32 %v31, %v33
    %v35 = vrot.slane %v22, %v34
    %v37 = vunpack.c.l.s4 1983009808
    %v38 = vunpack.c.0.s8 %v37
    %v39 = vlaneseq
    %v40 = vshrl.u32 %v39, 7
    %v41 = vsub.s32 %v38, %v40
    %v42 = vrot.slane %v28, %v41
    %v43 = vcombine.high %v35, %v35
    %v44 = vcombine.high %v42, %v42
    %v46 = vunpack.c.l.s4 1983009808
    %v47 = vunpack.c.0.s8 %v46
    %v48 = vlaneseq
    %v49 = vshrl.u32 %v48, 7
    %v50 = vsub.s32 %v47, %v49
    %v51 = vrot.slane %v23, %v50
    %v52 = vcombine.high %v51, %v51
    %53 = vrot.lane.b32.xlu0 %v35, 127
    %v54 = vpop.permute.xlu0 %53
    %55 = vrot.lane.b32.xlu0 %v43, 127
    %v56 = vpop.permute.xlu0 %55
    %57 = vrot.lane.b32.xlu0 %v42, 127
    %v58 = vpop.permute.xlu0 %57
    %59 = vrot.lane.b32.xlu0 %v44, 127
    %v60 = vpop.permute.xlu0 %59
    %61 = vrot.lane.b32.xlu0 %v51, 127
    %v62 = vpop.permute.xlu0 %61
    %63 = vrot.lane.b32.xlu0 %v52, 127
    %v64 = vpop.permute.xlu0 %63
    %vm65 = vcmask 1039360
    %v66 = vsel %vm65, %v54, %v56
    %v67 = vsel %vm65, %v56, %v58
    %v68 = vsel %vm65, %v58, %v60
    %v69 = vsel %vm65, %v60, %v62
    %v70 = vsel %vm65, %v62, %v64
    %vm71 = vcmask 31744
    %v73 = vsel %vm71, %v25, 0
    %vm75 = vcmask 1041408
    %v77 = vsel %vm75, %v66, 0
    %v80 = vsel %vm75, %v67, 0
    %v83 = vsel %vm75, %v68, 0
    %v86 = vsel %vm75, %v69, 0
    %v89 = vsel %vm75, %v70, 0
    %91 = vmatprep.subr.bf16.mxu0 %v80
    %92 = vmatpush1.bf16.msra.mxu0 %v77
    %93 = vmatprep.subr.bf16.mxu0 0
    %94 = vmatpush1.bf16.msra.mxu0 0
    %95 = vmatprep.subr.bf16.mxu0 0
    %96 = vmatpush1.bf16.msra.mxu0 0
    %97 = vmatprep.subr.bf16.mxu0 0
    %98 = vmatpush1.bf16.msra.mxu0 0
    %99 = vmatprep.subr.bf16.mxu0 0
    %100 = vmatpush1.bf16.msra.mxu0 0
    %101 = vmatprep.subr.bf16.mxu0 0
    %102 = vmatpush1.bf16.msra.mxu0 0
    %103 = vmatprep.subr.bf16.mxu0 0
    %104 = vmatpush1.bf16.msra.mxu0 0
    %105 = vmatprep.subr.bf16.mxu0 0
    %106 = vmatpush1.bf16.msra.mxu0 0
    %107 = vmatprep.subr.bf16.mxu0 0
    %108 = vmatpush1.bf16.msra.mxu0 0
    %109 = vmatprep.subr.bf16.mxu0 0
    %110 = vmatpush1.bf16.msra.mxu0 0
    %111 = vmatprep.subr.bf16.mxu0 0
    %112 = vmatpush1.bf16.msra.mxu0 0
    %113 = vmatprep.subr.bf16.mxu0 0
    %114 = vmatpush1.bf16.msra.mxu0 0
    %115 = vmatprep.subr.bf16.mxu0 0
    %116 = vmatpush1.bf16.msra.mxu0 0
    %117 = vmatprep.subr.bf16.mxu0 0
    %118 = vmatpush1.bf16.msra.mxu0 0
    %119 = vmatprep.subr.bf16.mxu0 0
    %120 = vmatpush1.bf16.msra.mxu0 0
    %121 = vmatprep.subr.bf16.mxu0 0
    %122 = vmatpush1.bf16.msra.mxu0 0
    %123 = vmatprep.mubr.bf16.mxu0 0
    %124 = vmatmul.mubr.bf16.gmra.mrb[0].mxu0 %v73
    %v125 = vpop.f32.mrb[0].mxu0
    %v126 = vadd.f32 0.0, %v125
    %v127 = vpop.f32.mrb[0].mxu0
    %v128 = vadd.f32 0.0, %v127
    %v129 = vpop.f32.mrb[0].mxu0
    %v130 = vpop.f32.mrb[0].mxu0
    %131 = vdwg.mxu0
    %132 = vmatprep.subr.bf16.mxu0 %v86
    %133 = vmatpush1.bf16.msra.mxu0 %v83
    %134 = vmatprep.subr.bf16.mxu0 0
    %135 = vmatpush1.bf16.msra.mxu0 0
    %136 = vmatprep.subr.bf16.mxu0 0
    %137 = vmatpush1.bf16.msra.mxu0 0
    %138 = vmatprep.subr.bf16.mxu0 0
    %139 = vmatpush1.bf16.msra.mxu0 0
    %140 = vmatprep.subr.bf16.mxu0 0
    %141 = vmatpush1.bf16.msra.mxu0 0
    %142 = vmatprep.subr.bf16.mxu0 0
    %143 = vmatpush1.bf16.msra.mxu0 0
    %144 = vmatprep.subr.bf16.mxu0 0
    %145 = vmatpush1.bf16.msra.mxu0 0
    %146 = vmatprep.subr.bf16.mxu0 0
    %147 = vmatpush1.bf16.msra.mxu0 0
    %148 = vmatprep.subr.bf16.mxu0 0
    %149 = vmatpush1.bf16.msra.mxu0 0
    %150 = vmatprep.subr.bf16.mxu0 0
    %151 = vmatpush1.bf16.msra.mxu0 0
    %152 = vmatprep.subr.bf16.mxu0 0
    %153 = vmatpush1.bf16.msra.mxu0 0
    %154 = vmatprep.subr.bf16.mxu0 0
    %155 = vmatpush1.bf16.msra.mxu0 0
    %156 = vmatprep.subr.bf16.mxu0 0
    %157 = vmatpush1.bf16.msra.mxu0 0
    %158 = vmatprep.subr.bf16.mxu0 0
    %159 = vmatpush1.bf16.msra.mxu0 0
    %160 = vmatprep.subr.bf16.mxu0 0
    %161 = vmatpush1.bf16.msra.mxu0 0
    %162 = vmatprep.subr.bf16.mxu0 0
    %163 = vmatpush1.bf16.msra.mxu0 0
    %164 = vmatprep.mubr.bf16.mxu0 0
    %165 = vmatmul.mubr.bf16.gmra.mrb[0].mxu0 %v73
    %v166 = vpop.f32.mrb[0].mxu0
    %v167 = vadd.f32 0.0, %v166
    %v168 = vpop.f32.mrb[0].mxu0
    %v169 = vadd.f32 0.0, %v168
    %v170 = vpop.f32.mrb[0].mxu0
    %v171 = vpop.f32.mrb[0].mxu0
    %172 = vdwg.mxu0
    %173 = vmatprep.subr.bf16.mxu0 0
    %174 = vmatpush1.bf16.msra.mxu0 %v89
    %175 = vmatprep.subr.bf16.mxu0 0
    %176 = vmatpush1.bf16.msra.mxu0 0
    %177 = vmatprep.subr.bf16.mxu0 0
    %178 = vmatpush1.bf16.msra.mxu0 0
    %179 = vmatprep.subr.bf16.mxu0 0
    %180 = vmatpush1.bf16.msra.mxu0 0
    %181 = vmatprep.subr.bf16.mxu0 0
    %182 = vmatpush1.bf16.msra.mxu0 0
    %183 = vmatprep.subr.bf16.mxu0 0
    %184 = vmatpush1.bf16.msra.mxu0 0
    %185 = vmatprep.subr.bf16.mxu0 0
    %186 = vmatpush1.bf16.msra.mxu0 0
    %187 = vmatprep.subr.bf16.mxu0 0
    %188 = vmatpush1.bf16.msra.mxu0 0
    %189 = vmatprep.subr.bf16.mxu0 0
    %190 = vmatpush1.bf16.msra.mxu0 0
    %191 = vmatprep.subr.bf16.mxu0 0
    %192 = vmatpush1.bf16.msra.mxu0 0
    %193 = vmatprep.subr.bf16.mxu0 0
    %194 = vmatpush1.bf16.msra.mxu0 0
    %195 = vmatprep.subr.bf16.mxu0 0
    %196 = vmatpush1.bf16.msra.mxu0 0
    %197 = vmatprep.subr.bf16.mxu0 0
    %198 = vmatpush1.bf16.msra.mxu0 0
    %199 = vmatprep.subr.bf16.mxu0 0
    %200 = vmatpush1.bf16.msra.mxu0 0
    %201 = vmatprep.subr.bf16.mxu0 0
    %202 = vmatpush1.bf16.msra.mxu0 0
    %203 = vmatprep.subr.bf16.mxu0 0
    %204 = vmatpush1.bf16.msra.mxu0 0
    %205 = vmatprep.mubr.bf16.mxu0 0
    %206 = vmatmul.mubr.bf16.gmra.mrb[0].mxu0 %v73
    %v207 = vpop.f32.mrb[0].mxu0
    %v208 = vadd.f32 0.0, %v207
    %v209 = vpop.f32.mrb[0].mxu0
    %v210 = vpop.f32.mrb[0].mxu0
    %v211 = vpop.f32.mrb[0].mxu0
    %212 = vdwg.mxu0
    %v215 = vcombine.high %v19, %v19
    %v217 = vunpack.c.l.s4 1983009808
    %v218 = vunpack.c.0.s8 %v217
    %v219 = vlaneseq
    %v220 = vshrl.u32 %v219, 7
    %v221 = vsub.s32 %v218, %v220
    %v222 = vrot.slane %v19, %v221
    %v224 = vunpack.c.l.s4 1983009808
    %v225 = vunpack.c.0.s8 %v224
    %v226 = vlaneseq
    %v227 = vshrl.u32 %v226, 7
    %v228 = vsub.s32 %v225, %v227
    %v229 = vrot.slane %v215, %v228
    %v230 = vcombine.high %v222, %v222
    %v231 = vcombine.high %v229, %v229
    %v233 = vunpack.c.l.s4 1983009808
    %v234 = vunpack.c.0.s8 %v233
    %v235 = vlaneseq
    %v236 = vshrl.u32 %v235, 7
    %v237 = vsub.s32 %v234, %v236
    %v238 = vrot.slane %v20, %v237
    %v240 = vsel %vm71, %v21, 0
    %v243 = vsel %vm75, %v222, 0
    %v246 = vsel %vm75, %v230, 0
    %v249 = vsel %vm75, %v229, 0
    %v252 = vsel %vm75, %v231, 0
    %v255 = vsel %vm75, %v238, 0
    %257 = vmatprep.subr.bf16.mxu0 %v246
    %258 = vmatpush1.bf16.msra.mxu0 %v243
    %259 = vmatprep.subr.bf16.mxu0 0
    %260 = vmatpush1.bf16.msra.mxu0 0
    %261 = vmatprep.subr.bf16.mxu0 0
    %262 = vmatpush1.bf16.msra.mxu0 0
    %263 = vmatprep.subr.bf16.mxu0 0
    %264 = vmatpush1.bf16.msra.mxu0 0
    %265 = vmatprep.subr.bf16.mxu0 0
    %266 = vmatpush1.bf16.msra.mxu0 0
    %267 = vmatprep.subr.bf16.mxu0 0
    %268 = vmatpush1.bf16.msra.mxu0 0
    %269 = vmatprep.subr.bf16.mxu0 0
    %270 = vmatpush1.bf16.msra.mxu0 0
    %271 = vmatprep.subr.bf16.mxu0 0
    %272 = vmatpush1.bf16.msra.mxu0 0
    %273 = vmatprep.subr.bf16.mxu0 0
    %274 = vmatpush1.bf16.msra.mxu0 0
    %275 = vmatprep.subr.bf16.mxu0 0
    %276 = vmatpush1.bf16.msra.mxu0 0
    %277 = vmatprep.subr.bf16.mxu0 0
    %278 = vmatpush1.bf16.msra.mxu0 0
    %279 = vmatprep.subr.bf16.mxu0 0
    %280 = vmatpush1.bf16.msra.mxu0 0
    %281 = vmatprep.subr.bf16.mxu0 0
    %282 = vmatpush1.bf16.msra.mxu0 0
    %283 = vmatprep.subr.bf16.mxu0 0
    %284 = vmatpush1.bf16.msra.mxu0 0
    %285 = vmatprep.subr.bf16.mxu0 0
    %286 = vmatpush1.bf16.msra.mxu0 0
    %287 = vmatprep.subr.bf16.mxu0 0
    %288 = vmatpush1.bf16.msra.mxu0 0
    %289 = vmatprep.mubr.bf16.mxu0 0
    %290 = vmatmul.mubr.bf16.gmra.mrb[0].mxu0 %v240
    %v291 = vpop.f32.mrb[0].mxu0
    %v292 = vadd.f32 %v126, %v291
    %v293 = vpop.f32.mrb[0].mxu0
    %v294 = vadd.f32 %v128, %v293
    %v295 = vpop.f32.mrb[0].mxu0
    %v296 = vpop.f32.mrb[0].mxu0
    %297 = vdwg.mxu0
    %298 = vmatprep.subr.bf16.mxu0 %v252
    %299 = vmatpush1.bf16.msra.mxu0 %v249
    %300 = vmatprep.subr.bf16.mxu0 0
    %301 = vmatpush1.bf16.msra.mxu0 0
    %302 = vmatprep.subr.bf16.mxu0 0
    %303 = vmatpush1.bf16.msra.mxu0 0
    %304 = vmatprep.subr.bf16.mxu0 0
    %305 = vmatpush1.bf16.msra.mxu0 0
    %306 = vmatprep.subr.bf16.mxu0 0
    %307 = vmatpush1.bf16.msra.mxu0 0
    %308 = vmatprep.subr.bf16.mxu0 0
    %309 = vmatpush1.bf16.msra.mxu0 0
    %310 = vmatprep.subr.bf16.mxu0 0
    %311 = vmatpush1.bf16.msra.mxu0 0
    %312 = vmatprep.subr.bf16.mxu0 0
    %313 = vmatpush1.bf16.msra.mxu0 0
    %314 = vmatprep.subr.bf16.mxu0 0
    %315 = vmatpush1.bf16.msra.mxu0 0
    %316 = vmatprep.subr.bf16.mxu0 0
    %317 = vmatpush1.bf16.msra.mxu0 0
    %318 = vmatprep.subr.bf16.mxu0 0
    %319 = vmatpush1.bf16.msra.mxu0 0
    %320 = vmatprep.subr.bf16.mxu0 0
    %321 = vmatpush1.bf16.msra.mxu0 0
    %322 = vmatprep.subr.bf16.mxu0 0
    %323 = vmatpush1.bf16.msra.mxu0 0
    %324 = vmatprep.subr.bf16.mxu0 0
    %325 = vmatpush1.bf16.msra.mxu0 0
    %326 = vmatprep.subr.bf16.mxu0 0
    %327 = vmatpush1.bf16.msra.mxu0 0
    %328 = vmatprep.subr.bf16.mxu0 0
    %329 = vmatpush1.bf16.msra.mxu0 0
    %330 = vmatprep.mubr.bf16.mxu0 0
    %331 = vmatmul.mubr.bf16.gmra.mrb[0].mxu0 %v240
    %v332 = vpop.f32.mrb[0].mxu0
    %v333 = vadd.f32 %v167, %v332
    %v334 = vpop.f32.mrb[0].mxu0
    %v335 = vadd.f32 %v169, %v334
    %v336 = vpop.f32.mrb[0].mxu0
    %v337 = vpop.f32.mrb[0].mxu0
    %338 = vdwg.mxu0
    %339 = vmatprep.subr.bf16.mxu0 0
    %340 = vmatpush1.bf16.msra.mxu0 %v255
    %341 = vmatprep.subr.bf16.mxu0 0
    %342 = vmatpush1.bf16.msra.mxu0 0
    %343 = vmatprep.subr.bf16.mxu0 0
    %344 = vmatpush1.bf16.msra.mxu0 0
    %345 = vmatprep.subr.bf16.mxu0 0
    %346 = vmatpush1.bf16.msra.mxu0 0
    %347 = vmatprep.subr.bf16.mxu0 0
    %348 = vmatpush1.bf16.msra.mxu0 0
    %349 = vmatprep.subr.bf16.mxu0 0
    %350 = vmatpush1.bf16.msra.mxu0 0
    %351 = vmatprep.subr.bf16.mxu0 0
    %352 = vmatpush1.bf16.msra.mxu0 0
    %353 = vmatprep.subr.bf16.mxu0 0
    %354 = vmatpush1.bf16.msra.mxu0 0
    %355 = vmatprep.subr.bf16.mxu0 0
    %356 = vmatpush1.bf16.msra.mxu0 0
    %357 = vmatprep.subr.bf16.mxu0 0
    %358 = vmatpush1.bf16.msra.mxu0 0
    %359 = vmatprep.subr.bf16.mxu0 0
    %360 = vmatpush1.bf16.msra.mxu0 0
    %361 = vmatprep.subr.bf16.mxu0 0
    %362 = vmatpush1.bf16.msra.mxu0 0
    %363 = vmatprep.subr.bf16.mxu0 0
    %364 = vmatpush1.bf16.msra.mxu0 0
    %365 = vmatprep.subr.bf16.mxu0 0
    %366 = vmatpush1.bf16.msra.mxu0 0
    %367 = vmatprep.subr.bf16.mxu0 0
    %368 = vmatpush1.bf16.msra.mxu0 0
    %369 = vmatprep.subr.bf16.mxu0 0
    %370 = vmatpush1.bf16.msra.mxu0 0
    %371 = vmatprep.mubr.bf16.mxu0 0
    %372 = vmatmul.mubr.bf16.gmra.mrb[0].mxu0 %v240
    %v373 = vpop.f32.mrb[0].mxu0
    %v374 = vadd.f32 %v208, %v373
    %v375 = vpop.f32.mrb[0].mxu0
    %v376 = vpop.f32.mrb[0].mxu0
    %v377 = vpop.f32.mrb[0].mxu0
    %378 = vdwg.mxu0
    %v379 = vld [vmem:[%s0] sm:$0xff]
    %v380 = vld [vmem:[%s0 + $0x8] sm:$0xf]
    %s381 = scalar_lea.vmem %s1, 8
    %v382 = vld [vmem:[%s381] sm:$0xf]
    %v385 = vcombine.high %v379, %v379
    %v387 = vunpack.c.l.s4 1983009808
    %v388 = vunpack.c.0.s8 %v387
    %v389 = vlaneseq
    %v390 = vshrl.u32 %v389, 7
    %v391 = vsub.s32 %v388, %v390
    %v392 = vrot.slane %v379, %v391
    %v394 = vunpack.c.l.s4 1983009808
    %v395 = vunpack.c.0.s8 %v394
    %v396 = vlaneseq
    %v397 = vshrl.u32 %v396, 7
    %v398 = vsub.s32 %v395, %v397
    %v399 = vrot.slane %v385, %v398
    %v400 = vcombine.high %v392, %v392
    %v401 = vcombine.high %v399, %v399
    %v403 = vunpack.c.l.s4 1983009808
    %v404 = vunpack.c.0.s8 %v403
    %v405 = vlaneseq
    %v406 = vshrl.u32 %v405, 7
    %v407 = vsub.s32 %v404, %v406
    %v408 = vrot.slane %v380, %v407
    %v409 = vcombine.high %v408, %v408
    %410 = vrot.lane.b32.xlu0 %v392, 126
    %v411 = vpop.permute.xlu0 %410
    %412 = vrot.lane.b32.xlu0 %v400, 126
    %v413 = vpop.permute.xlu0 %412
    %414 = vrot.lane.b32.xlu0 %v399, 126
    %v415 = vpop.permute.xlu0 %414
    %416 = vrot.lane.b32.xlu0 %v401, 126
    %v417 = vpop.permute.xlu0 %416
    %418 = vrot.lane.b32.xlu0 %v408, 126
    %v419 = vpop.permute.xlu0 %418
    %420 = vrot.lane.b32.xlu0 %v409, 126
    %v421 = vpop.permute.xlu0 %420
    %vm422 = vcmask 1031168
    %v423 = vsel %vm422, %v411, %v413
    %v424 = vsel %vm422, %v413, %v415
    %v425 = vsel %vm422, %v415, %v417
    %v426 = vsel %vm422, %v417, %v419
    %v427 = vsel %vm422, %v419, %v421
    %v429 = vsel %vm71, %v382, 0
    %v432 = vsel %vm75, %v423, 0
    %v435 = vsel %vm75, %v424, 0
    %v438 = vsel %vm75, %v425, 0
    %v441 = vsel %vm75, %v426, 0
    %v444 = vsel %vm75, %v427, 0
    %446 = vmatprep.subr.bf16.mxu0 %v435
    %447 = vmatpush1.bf16.msra.mxu0 %v432
    %448 = vmatprep.subr.bf16.mxu0 0
    %449 = vmatpush1.bf16.msra.mxu0 0
    %450 = vmatprep.subr.bf16.mxu0 0
    %451 = vmatpush1.bf16.msra.mxu0 0
    %452 = vmatprep.subr.bf16.mxu0 0
    %453 = vmatpush1.bf16.msra.mxu0 0
    %454 = vmatprep.subr.bf16.mxu0 0
    %455 = vmatpush1.bf16.msra.mxu0 0
    %456 = vmatprep.subr.bf16.mxu0 0
    %457 = vmatpush1.bf16.msra.mxu0 0
    %458 = vmatprep.subr.bf16.mxu0 0
    %459 = vmatpush1.bf16.msra.mxu0 0
    %460 = vmatprep.subr.bf16.mxu0 0
    %461 = vmatpush1.bf16.msra.mxu0 0
    %462 = vmatprep.subr.bf16.mxu0 0
    %463 = vmatpush1.bf16.msra.mxu0 0
    %464 = vmatprep.subr.bf16.mxu0 0
    %465 = vmatpush1.bf16.msra.mxu0 0
    %466 = vmatprep.subr.bf16.mxu0 0
    %467 = vmatpush1.bf16.msra.mxu0 0
    %468 = vmatprep.subr.bf16.mxu0 0
    %469 = vmatpush1.bf16.msra.mxu0 0
    %470 = vmatprep.subr.bf16.mxu0 0
    %471 = vmatpush1.bf16.msra.mxu0 0
    %472 = vmatprep.subr.bf16.mxu0 0
    %473 = vmatpush1.bf16.msra.mxu0 0
    %474 = vmatprep.subr.bf16.mxu0 0
    %475 = vmatpush1.bf16.msra.mxu0 0
    %476 = vmatprep.subr.bf16.mxu0 0
    %477 = vmatpush1.bf16.msra.mxu0 0
    %478 = vmatprep.mubr.bf16.mxu0 0
    %479 = vmatmul.mubr.bf16.gmra.mrb[0].mxu0 %v429
    %v480 = vpop.f32.mrb[0].mxu0
    %v481 = vadd.f32 0.0, %v480
    %v482 = vpop.f32.mrb[0].mxu0
    %v483 = vadd.f32 0.0, %v482
    %v484 = vpop.f32.mrb[0].mxu0
    %v485 = vpop.f32.mrb[0].mxu0
    %486 = vdwg.mxu0
    %487 = vmatprep.subr.bf16.mxu0 %v441
    %488 = vmatpush1.bf16.msra.mxu0 %v438
    %489 = vmatprep.subr.bf16.mxu0 0
    %490 = vmatpush1.bf16.msra.mxu0 0
    %491 = vmatprep.subr.bf16.mxu0 0
    %492 = vmatpush1.bf16.msra.mxu0 0
    %493 = vmatprep.subr.bf16.mxu0 0
    %494 = vmatpush1.bf16.msra.mxu0 0
    %495 = vmatprep.subr.bf16.mxu0 0
    %496 = vmatpush1.bf16.msra.mxu0 0
    %497 = vmatprep.subr.bf16.mxu0 0
    %498 = vmatpush1.bf16.msra.mxu0 0
    %499 = vmatprep.subr.bf16.mxu0 0
    %500 = vmatpush1.bf16.msra.mxu0 0
    %501 = vmatprep.subr.bf16.mxu0 0
    %502 = vmatpush1.bf16.msra.mxu0 0
    %503 = vmatprep.subr.bf16.mxu0 0
    %504 = vmatpush1.bf16.msra.mxu0 0
    %505 = vmatprep.subr.bf16.mxu0 0
    %506 = vmatpush1.bf16.msra.mxu0 0
    %507 = vmatprep.subr.bf16.mxu0 0
    %508 = vmatpush1.bf16.msra.mxu0 0
    %509 = vmatprep.subr.bf16.mxu0 0
    %510 = vmatpush1.bf16.msra.mxu0 0
    %511 = vmatprep.subr.bf16.mxu0 0
    %512 = vmatpush1.bf16.msra.mxu0 0
    %513 = vmatprep.subr.bf16.mxu0 0
    %514 = vmatpush1.bf16.msra.mxu0 0
    %515 = vmatprep.subr.bf16.mxu0 0
    %516 = vmatpush1.bf16.msra.mxu0 0
    %517 = vmatprep.subr.bf16.mxu0 0
    %518 = vmatpush1.bf16.msra.mxu0 0
    %519 = vmatprep.mubr.bf16.mxu0 0
    %520 = vmatmul.mubr.bf16.gmra.mrb[0].mxu0 %v429
    %v521 = vpop.f32.mrb[0].mxu0
    %v522 = vadd.f32 0.0, %v521
    %v523 = vpop.f32.mrb[0].mxu0
    %v524 = vadd.f32 0.0, %v523
    %v525 = vpop.f32.mrb[0].mxu0
    %v526 = vpop.f32.mrb[0].mxu0
    %527 = vdwg.mxu0
    %528 = vmatprep.subr.bf16.mxu0 0
    %529 = vmatpush1.bf16.msra.mxu0 %v444
    %530 = vmatprep.subr.bf16.mxu0 0
    %531 = vmatpush1.bf16.msra.mxu0 0
    %532 = vmatprep.subr.bf16.mxu0 0
    %533 = vmatpush1.bf16.msra.mxu0 0
    %534 = vmatprep.subr.bf16.mxu0 0
    %535 = vmatpush1.bf16.msra.mxu0 0
    %536 = vmatprep.subr.bf16.mxu0 0
    %537 = vmatpush1.bf16.msra.mxu0 0
    %538 = vmatprep.subr.bf16.mxu0 0
    %539 = vmatpush1.bf16.msra.mxu0 0
    %540 = vmatprep.subr.bf16.mxu0 0
    %541 = vmatpush1.bf16.msra.mxu0 0
    %542 = vmatprep.subr.bf16.mxu0 0
    %543 = vmatpush1.bf16.msra.mxu0 0
    %544 = vmatprep.subr.bf16.mxu0 0
    %545 = vmatpush1.bf16.msra.mxu0 0
    %546 = vmatprep.subr.bf16.mxu0 0
    %547 = vmatpush1.bf16.msra.mxu0 0
    %548 = vmatprep.subr.bf16.mxu0 0
    %549 = vmatpush1.bf16.msra.mxu0 0
    %550 = vmatprep.subr.bf16.mxu0 0
    %551 = vmatpush1.bf16.msra.mxu0 0
    %552 = vmatprep.subr.bf16.mxu0 0
    %553 = vmatpush1.bf16.msra.mxu0 0
    %554 = vmatprep.subr.bf16.mxu0 0
    %555 = vmatpush1.bf16.msra.mxu0 0
    %556 = vmatprep.subr.bf16.mxu0 0
    %557 = vmatpush1.bf16.msra.mxu0 0
    %558 = vmatprep.subr.bf16.mxu0 0
    %559 = vmatpush1.bf16.msra.mxu0 0
    %560 = vmatprep.mubr.bf16.mxu0 0
    %561 = vmatmul.mubr.bf16.gmra.mrb[0].mxu0 %v429
    %v562 = vpop.f32.mrb[0].mxu0
    %v563 = vadd.f32 0.0, %v562
    %v564 = vpop.f32.mrb[0].mxu0
    %v565 = vpop.f32.mrb[0].mxu0
    %v566 = vpop.f32.mrb[0].mxu0
    %567 = vdwg.mxu0
    %v568 = vadd.f32 %v292, %v481
    %v569 = vadd.f32 %v294, %v483
    %v570 = vadd.f32 %v333, %v522
    %v571 = vadd.f32 %v335, %v524
    %v572 = vadd.f32 %v374, %v563
    %v573 = vld [vmem:[%s0] sm:$0xff]
    %v574 = vld [vmem:[%s0 + $0x8] sm:$0xf]
    %s575 = scalar_lea.vmem %s1, 12
    %v576 = vld [vmem:[%s575] sm:$0xf]
    %v579 = vcombine.high %v573, %v573
    %v581 = vunpack.c.l.s4 1983009808
    %v582 = vunpack.c.0.s8 %v581
    %v583 = vlaneseq
    %v584 = vshrl.u32 %v583, 7
    %v585 = vsub.s32 %v582, %v584
    %v586 = vrot.slane %v573, %v585
    %v588 = vunpack.c.l.s4 1983009808
    %v589 = vunpack.c.0.s8 %v588
    %v590 = vlaneseq
    %v591 = vshrl.u32 %v590, 7
    %v592 = vsub.s32 %v589, %v591
    %v593 = vrot.slane %v579, %v592
    %v594 = vcombine.high %v586, %v586
    %v595 = vcombine.high %v593, %v593
    %v597 = vunpack.c.l.s4 1983009808
    %v598 = vunpack.c.0.s8 %v597
    %v599 = vlaneseq
    %v600 = vshrl.u32 %v599, 7
    %v601 = vsub.s32 %v598, %v600
    %v602 = vrot.slane %v574, %v601
    %v603 = vcombine.high %v602, %v602
    %604 = vrot.lane.b32.xlu0 %v586, 110
    %v605 = vpop.permute.xlu0 %604
    %606 = vrot.lane.b32.xlu0 %v594, 110
    %v607 = vpop.permute.xlu0 %606
    %608 = vrot.lane.b32.xlu0 %v593, 110
    %v609 = vpop.permute.xlu0 %608
    %610 = vrot.lane.b32.xlu0 %v595, 110
    %v611 = vpop.permute.xlu0 %610
    %612 = vrot.lane.b32.xlu0 %v602, 110
    %v613 = vpop.permute.xlu0 %612
    %614 = vrot.lane.b32.xlu0 %v603, 110
    %v615 = vpop.permute.xlu0 %614
    %vm616 = vcmask 900096
    %v617 = vsel %vm616, %v605, %v607
    %v618 = vsel %vm616, %v607, %v609
    %v619 = vsel %vm616, %v609, %v611
    %v620 = vsel %vm616, %v611, %v613
    %v621 = vsel %vm616, %v613, %v615
    %v623 = vsel %vm71, %v576, 0
    %v626 = vsel %vm75, %v617, 0
    %v629 = vsel %vm75, %v618, 0
    %v632 = vsel %vm75, %v619, 0
    %v635 = vsel %vm75, %v620, 0
    %v638 = vsel %vm75, %v621, 0
    %640 = vmatprep.subr.bf16.mxu0 %v629
    %641 = vmatpush1.bf16.msra.mxu0 %v626
    %642 = vmatprep.subr.bf16.mxu0 0
    %643 = vmatpush1.bf16.msra.mxu0 0
    %644 = vmatprep.subr.bf16.mxu0 0
    %645 = vmatpush1.bf16.msra.mxu0 0
    %646 = vmatprep.subr.bf16.mxu0 0
    %647 = vmatpush1.bf16.msra.mxu0 0
    %648 = vmatprep.subr.bf16.mxu0 0
    %649 = vmatpush1.bf16.msra.mxu0 0
    %650 = vmatprep.subr.bf16.mxu0 0
    %651 = vmatpush1.bf16.msra.mxu0 0
    %652 = vmatprep.subr.bf16.mxu0 0
    %653 = vmatpush1.bf16.msra.mxu0 0
    %654 = vmatprep.subr.bf16.mxu0 0
    %655 = vmatpush1.bf16.msra.mxu0 0
    %656 = vmatprep.subr.bf16.mxu0 0
    %657 = vmatpush1.bf16.msra.mxu0 0
    %658 = vmatprep.subr.bf16.mxu0 0
    %659 = vmatpush1.bf16.msra.mxu0 0
    %660 = vmatprep.subr.bf16.mxu0 0
    %661 = vmatpush1.bf16.msra.mxu0 0
    %662 = vmatprep.subr.bf16.mxu0 0
    %663 = vmatpush1.bf16.msra.mxu0 0
    %664 = vmatprep.subr.bf16.mxu0 0
    %665 = vmatpush1.bf16.msra.mxu0 0
    %666 = vmatprep.subr.bf16.mxu0 0
    %667 = vmatpush1.bf16.msra.mxu0 0
    %668 = vmatprep.subr.bf16.mxu0 0
    %669 = vmatpush1.bf16.msra.mxu0 0
    %670 = vmatprep.subr.bf16.mxu0 0
    %671 = vmatpush1.bf16.msra.mxu0 0
    %672 = vmatprep.mubr.bf16.mxu0 0
    %673 = vmatmul.mubr.bf16.gmra.mrb[0].mxu0 %v623
    %v674 = vpop.f32.mrb[0].mxu0
    %v675 = vadd.f32 0.0, %v674
    %v676 = vpop.f32.mrb[0].mxu0
    %v677 = vadd.f32 0.0, %v676
    %v678 = vpop.f32.mrb[0].mxu0
    %v679 = vpop.f32.mrb[0].mxu0
    %680 = vdwg.mxu0
    %681 = vmatprep.subr.bf16.mxu0 %v635
    %682 = vmatpush1.bf16.msra.mxu0 %v632
    %683 = vmatprep.subr.bf16.mxu0 0
    %684 = vmatpush1.bf16.msra.mxu0 0
    %685 = vmatprep.subr.bf16.mxu0 0
    %686 = vmatpush1.bf16.msra.mxu0 0
    %687 = vmatprep.subr.bf16.mxu0 0
    %688 = vmatpush1.bf16.msra.mxu0 0
    %689 = vmatprep.subr.bf16.mxu0 0
    %690 = vmatpush1.bf16.msra.mxu0 0
    %691 = vmatprep.subr.bf16.mxu0 0
    %692 = vmatpush1.bf16.msra.mxu0 0
    %693 = vmatprep.subr.bf16.mxu0 0
    %694 = vmatpush1.bf16.msra.mxu0 0
    %695 = vmatprep.subr.bf16.mxu0 0
    %696 = vmatpush1.bf16.msra.mxu0 0
    %697 = vmatprep.subr.bf16.mxu0 0
    %698 = vmatpush1.bf16.msra.mxu0 0
    %699 = vmatprep.subr.bf16.mxu0 0
    %700 = vmatpush1.bf16.msra.mxu0 0
    %701 = vmatprep.subr.bf16.mxu0 0
    %702 = vmatpush1.bf16.msra.mxu0 0
    %703 = vmatprep.subr.bf16.mxu0 0
    %704 = vmatpush1.bf16.msra.mxu0 0
    %705 = vmatprep.subr.bf16.mxu0 0
    %706 = vmatpush1.bf16.msra.mxu0 0
    %707 = vmatprep.subr.bf16.mxu0 0
    %708 = vmatpush1.bf16.msra.mxu0 0
    %709 = vmatprep.subr.bf16.mxu0 0
    %710 = vmatpush1.bf16.msra.mxu0 0
    %711 = vmatprep.subr.bf16.mxu0 0
    %712 = vmatpush1.bf16.msra.mxu0 0
    %713 = vmatprep.mubr.bf16.mxu0 0
    %714 = vmatmul.mubr.bf16.gmra.mrb[0].mxu0 %v623
    %v715 = vpop.f32.mrb[0].mxu0
    %v716 = vadd.f32 0.0, %v715
    %v717 = vpop.f32.mrb[0].mxu0
    %v718 = vadd.f32 0.0, %v717
    %v719 = vpop.f32.mrb[0].mxu0
    %v720 = vpop.f32.mrb[0].mxu0
    %721 = vdwg.mxu0
    %722 = vmatprep.subr.bf16.mxu0 0
    %723 = vmatpush1.bf16.msra.mxu0 %v638
    %724 = vmatprep.subr.bf16.mxu0 0
    %725 = vmatpush1.bf16.msra.mxu0 0
    %726 = vmatprep.subr.bf16.mxu0 0
    %727 = vmatpush1.bf16.msra.mxu0 0
    %728 = vmatprep.subr.bf16.mxu0 0
    %729 = vmatpush1.bf16.msra.mxu0 0
    %730 = vmatprep.subr.bf16.mxu0 0
    %731 = vmatpush1.bf16.msra.mxu0 0
    %732 = vmatprep.subr.bf16.mxu0 0
    %733 = vmatpush1.bf16.msra.mxu0 0
    %734 = vmatprep.subr.bf16.mxu0 0
    %735 = vmatpush1.bf16.msra.mxu0 0
    %736 = vmatprep.subr.bf16.mxu0 0
    %737 = vmatpush1.bf16.msra.mxu0 0
    %738 = vmatprep.subr.bf16.mxu0 0
    %739 = vmatpush1.bf16.msra.mxu0 0
    %740 = vmatprep.subr.bf16.mxu0 0
    %741 = vmatpush1.bf16.msra.mxu0 0
    %742 = vmatprep.subr.bf16.mxu0 0
    %743 = vmatpush1.bf16.msra.mxu0 0
    %744 = vmatprep.subr.bf16.mxu0 0
    %745 = vmatpush1.bf16.msra.mxu0 0
    %746 = vmatprep.subr.bf16.mxu0 0
    %747 = vmatpush1.bf16.msra.mxu0 0
    %748 = vmatprep.subr.bf16.mxu0 0
    %749 = vmatpush1.bf16.msra.mxu0 0
    %750 = vmatprep.subr.bf16.mxu0 0
    %751 = vmatpush1.bf16.msra.mxu0 0
    %752 = vmatprep.subr.bf16.mxu0 0
    %753 = vmatpush1.bf16.msra.mxu0 0
    %754 = vmatprep.mubr.bf16.mxu0 0
    %755 = vmatmul.mubr.bf16.gmra.mrb[0].mxu0 %v623
    %v756 = vpop.f32.mrb[0].mxu0
    %v757 = vadd.f32 0.0, %v756
    %v758 = vpop.f32.mrb[0].mxu0
    %v759 = vpop.f32.mrb[0].mxu0
    %v760 = vpop.f32.mrb[0].mxu0
    %761 = vdwg.mxu0
    %v762 = vadd.f32 %v568, %v675
    %v763 = vadd.f32 %v569, %v677
    %v764 = vadd.f32 %v570, %v716
    %v765 = vadd.f32 %v571, %v718
    %v766 = vadd.f32 %v572, %v757
    %v767 = vld [vmem:[%s0] sm:$0xff]
    %v768 = vld [vmem:[%s0 + $0x8] sm:$0xf]
    %s769 = scalar_lea.vmem %s1, 16
    %v770 = vld [vmem:[%s769] sm:$0xf]
    %v773 = vcombine.high %v767, %v767
    %v775 = vunpack.c.l.s4 1983009808
    %v776 = vunpack.c.0.s8 %v775
    %v777 = vlaneseq
    %v778 = vshrl.u32 %v777, 7
    %v779 = vsub.s32 %v776, %v778
    %v780 = vrot.slane %v767, %v779
    %v782 = vunpack.c.l.s4 1983009808
    %v783 = vunpack.c.0.s8 %v782
    %v784 = vlaneseq
    %v785 = vshrl.u32 %v784, 7
    %v786 = vsub.s32 %v783, %v785
    %v787 = vrot.slane %v773, %v786
    %v788 = vcombine.high %v780, %v780
    %v789 = vcombine.high %v787, %v787
    %v791 = vunpack.c.l.s4 1983009808
    %v792 = vunpack.c.0.s8 %v791
    %v793 = vlaneseq
    %v794 = vshrl.u32 %v793, 7
    %v795 = vsub.s32 %v792, %v794
    %v796 = vrot.slane %v768, %v795
    %v797 = vcombine.high %v796, %v796
    %798 = vrot.lane.b32.xlu0 %v780, 109
    %v799 = vpop.permute.xlu0 %798
    %800 = vrot.lane.b32.xlu0 %v788, 109
    %v801 = vpop.permute.xlu0 %800
    %802 = vrot.lane.b32.xlu0 %v787, 109
    %v803 = vpop.permute.xlu0 %802
    %804 = vrot.lane.b32.xlu0 %v789, 109
    %v805 = vpop.permute.xlu0 %804
    %806 = vrot.lane.b32.xlu0 %v796, 109
    %v807 = vpop.permute.xlu0 %806
    %808 = vrot.lane.b32.xlu0 %v797, 109
    %v809 = vpop.permute.xlu0 %808
    %vm810 = vcmask 891904
    %v811 = vsel %vm810, %v799, %v801
    %v812 = vsel %vm810, %v801, %v803
    %v813 = vsel %vm810, %v803, %v805
    %v814 = vsel %vm810, %v805, %v807
    %v815 = vsel %vm810, %v807, %v809
    %v817 = vsel %vm71, %v770, 0
    %v820 = vsel %vm75, %v811, 0
    %v823 = vsel %vm75, %v812, 0
    %v826 = vsel %vm75, %v813, 0
    %v829 = vsel %vm75, %v814, 0
    %v832 = vsel %vm75, %v815, 0
    %834 = vmatprep.subr.bf16.mxu0 %v823
    %835 = vmatpush1.bf16.msra.mxu0 %v820
    %836 = vmatprep.subr.bf16.mxu0 0
    %837 = vmatpush1.bf16.msra.mxu0 0
    %838 = vmatprep.subr.bf16.mxu0 0
    %839 = vmatpush1.bf16.msra.mxu0 0
    %840 = vmatprep.subr.bf16.mxu0 0
    %841 = vmatpush1.bf16.msra.mxu0 0
    %842 = vmatprep.subr.bf16.mxu0 0
    %843 = vmatpush1.bf16.msra.mxu0 0
    %844 = vmatprep.subr.bf16.mxu0 0
    %845 = vmatpush1.bf16.msra.mxu0 0
    %846 = vmatprep.subr.bf16.mxu0 0
    %847 = vmatpush1.bf16.msra.mxu0 0
    %848 = vmatprep.subr.bf16.mxu0 0
    %849 = vmatpush1.bf16.msra.mxu0 0
    %850 = vmatprep.subr.bf16.mxu0 0
    %851 = vmatpush1.bf16.msra.mxu0 0
    %852 = vmatprep.subr.bf16.mxu0 0
    %853 = vmatpush1.bf16.msra.mxu0 0
    %854 = vmatprep.subr.bf16.mxu0 0
    %855 = vmatpush1.bf16.msra.mxu0 0
    %856 = vmatprep.subr.bf16.mxu0 0
    %857 = vmatpush1.bf16.msra.mxu0 0
    %858 = vmatprep.subr.bf16.mxu0 0
    %859 = vmatpush1.bf16.msra.mxu0 0
    %860 = vmatprep.subr.bf16.mxu0 0
    %861 = vmatpush1.bf16.msra.mxu0 0
    %862 = vmatprep.subr.bf16.mxu0 0
    %863 = vmatpush1.bf16.msra.mxu0 0
    %864 = vmatprep.subr.bf16.mxu0 0
    %865 = vmatpush1.bf16.msra.mxu0 0
    %866 = vmatprep.mubr.bf16.mxu0 0
    %867 = vmatmul.mubr.bf16.gmra.mrb[0].mxu0 %v817
    %v868 = vpop.f32.mrb[0].mxu0
    %v869 = vadd.f32 0.0, %v868
    %v870 = vpop.f32.mrb[0].mxu0
    %v871 = vadd.f32 0.0, %v870
    %v872 = vpop.f32.mrb[0].mxu0
    %v873 = vpop.f32.mrb[0].mxu0
    %874 = vdwg.mxu0
    %875 = vmatprep.subr.bf16.mxu0 %v829
    %876 = vmatpush1.bf16.msra.mxu0 %v826
    %877 = vmatprep.subr.bf16.mxu0 0
    %878 = vmatpush1.bf16.msra.mxu0 0
    %879 = vmatprep.subr.bf16.mxu0 0
    %880 = vmatpush1.bf16.msra.mxu0 0
    %881 = vmatprep.subr.bf16.mxu0 0
    %882 = vmatpush1.bf16.msra.mxu0 0
    %883 = vmatprep.subr.bf16.mxu0 0
    %884 = vmatpush1.bf16.msra.mxu0 0
    %885 = vmatprep.subr.bf16.mxu0 0
    %886 = vmatpush1.bf16.msra.mxu0 0
    %887 = vmatprep.subr.bf16.mxu0 0
    %888 = vmatpush1.bf16.msra.mxu0 0
    %889 = vmatprep.subr.bf16.mxu0 0
    %890 = vmatpush1.bf16.msra.mxu0 0
    %891 = vmatprep.subr.bf16.mxu0 0
    %892 = vmatpush1.bf16.msra.mxu0 0
    %893 = vmatprep.subr.bf16.mxu0 0
    %894 = vmatpush1.bf16.msra.mxu0 0
    %895 = vmatprep.subr.bf16.mxu0 0
    %896 = vmatpush1.bf16.msra.mxu0 0
    %897 = vmatprep.subr.bf16.mxu0 0
    %898 = vmatpush1.bf16.msra.mxu0 0
    %899 = vmatprep.subr.bf16.mxu0 0
    %900 = vmatpush1.bf16.msra.mxu0 0
    %901 = vmatprep.subr.bf16.mxu0 0
    %902 = vmatpush1.bf16.msra.mxu0 0
    %903 = vmatprep.subr.bf16.mxu0 0
    %904 = vmatpush1.bf16.msra.mxu0 0
    %905 = vmatprep.subr.bf16.mxu0 0
    %906 = vmatpush1.bf16.msra.mxu0 0
    %907 = vmatprep.mubr.bf16.mxu0 0
    %908 = vmatmul.mubr.bf16.gmra.mrb[0].mxu0 %v817
    %v909 = vpop.f32.mrb[0].mxu0
    %v910 = vadd.f32 0.0, %v909
    %v911 = vpop.f32.mrb[0].mxu0
    %v912 = vadd.f32 0.0, %v911
    %v913 = vpop.f32.mrb[0].mxu0
    %v914 = vpop.f32.mrb[0].mxu0
    %915 = vdwg.mxu0
    %916 = vmatprep.subr.bf16.mxu0 0
    %917 = vmatpush1.bf16.msra.mxu0 %v832
    %918 = vmatprep.subr.bf16.mxu0 0
    %919 = vmatpush1.bf16.msra.mxu0 0
    %920 = vmatprep.subr.bf16.mxu0 0
    %921 = vmatpush1.bf16.msra.mxu0 0
    %922 = vmatprep.subr.bf16.mxu0 0
    %923 = vmatpush1.bf16.msra.mxu0 0
    %924 = vmatprep.subr.bf16.mxu0 0
    %925 = vmatpush1.bf16.msra.mxu0 0
    %926 = vmatprep.subr.bf16.mxu0 0
    %927 = vmatpush1.bf16.msra.mxu0 0
    %928 = vmatprep.subr.bf16.mxu0 0
    %929 = vmatpush1.bf16.msra.mxu0 0
    %930 = vmatprep.subr.bf16.mxu0 0
    %931 = vmatpush1.bf16.msra.mxu0 0
    %932 = vmatprep.subr.bf16.mxu0 0
    %933 = vmatpush1.bf16.msra.mxu0 0
    %934 = vmatprep.subr.bf16.mxu0 0
    %935 = vmatpush1.bf16.msra.mxu0 0
    %936 = vmatprep.subr.bf16.mxu0 0
    %937 = vmatpush1.bf16.msra.mxu0 0
    %938 = vmatprep.subr.bf16.mxu0 0
    %939 = vmatpush1.bf16.msra.mxu0 0
    %940 = vmatprep.subr.bf16.mxu0 0
    %941 = vmatpush1.bf16.msra.mxu0 0
    %942 = vmatprep.subr.bf16.mxu0 0
    %943 = vmatpush1.bf16.msra.mxu0 0
    %944 = vmatprep.subr.bf16.mxu0 0
    %945 = vmatpush1.bf16.msra.mxu0 0
    %946 = vmatprep.subr.bf16.mxu0 0
    %947 = vmatpush1.bf16.msra.mxu0 0
    %948 = vmatprep.mubr.bf16.mxu0 0
    %949 = vmatmul.mubr.bf16.gmra.mrb[0].mxu0 %v817
    %v950 = vpop.f32.mrb[0].mxu0
    %v951 = vadd.f32 0.0, %v950
    %v952 = vpop.f32.mrb[0].mxu0
    %v953 = vpop.f32.mrb[0].mxu0
    %v954 = vpop.f32.mrb[0].mxu0
    %955 = vdwg.mxu0
    %v956 = vadd.f32 %v762, %v869
    %v957 = vadd.f32 %v763, %v871
    %v958 = vadd.f32 %v764, %v910
    %v959 = vadd.f32 %v765, %v912
    %v960 = vadd.f32 %v766, %v951
    %v961 = vld [vmem:[%s0] sm:$0xff]
    %v962 = vld [vmem:[%s0 + $0x8] sm:$0xf]
    %s963 = scalar_lea.vmem %s1, 20
    %v964 = vld [vmem:[%s963] sm:$0xf]
    %v967 = vcombine.high %v961, %v961
    %v969 = vunpack.c.l.s4 1983009808
    %v970 = vunpack.c.0.s8 %v969
    %v971 = vlaneseq
    %v972 = vshrl.u32 %v971, 7
    %v973 = vsub.s32 %v970, %v972
    %v974 = vrot.slane %v961, %v973
    %v976 = vunpack.c.l.s4 1983009808
    %v977 = vunpack.c.0.s8 %v976
    %v978 = vlaneseq
    %v979 = vshrl.u32 %v978, 7
    %v980 = vsub.s32 %v977, %v979
    %v981 = vrot.slane %v967, %v980
    %v982 = vcombine.high %v974, %v974
    %v983 = vcombine.high %v981, %v981
    %v985 = vunpack.c.l.s4 1983009808
    %v986 = vunpack.c.0.s8 %v985
    %v987 = vlaneseq
    %v988 = vshrl.u32 %v987, 7
    %v989 = vsub.s32 %v986, %v988
    %v990 = vrot.slane %v962, %v989
    %v991 = vcombine.high %v990, %v990
    %992 = vrot.lane.b32.xlu0 %v974, 108
    %v993 = vpop.permute.xlu0 %992
    %994 = vrot.lane.b32.xlu0 %v982, 108
    %v995 = vpop.permute.xlu0 %994
    %996 = vrot.lane.b32.xlu0 %v981, 108
    %v997 = vpop.permute.xlu0 %996
    %998 = vrot.lane.b32.xlu0 %v983, 108
    %v999 = vpop.permute.xlu0 %998
    %1000 = vrot.lane.b32.xlu0 %v990, 108
    %v1001 = vpop.permute.xlu0 %1000
    %1002 = vrot.lane.b32.xlu0 %v991, 108
    %v1003 = vpop.permute.xlu0 %1002
    %vm1004 = vcmask 883712
    %v1005 = vsel %vm1004, %v993, %v995
    %v1006 = vsel %vm1004, %v995, %v997
    %v1007 = vsel %vm1004, %v997, %v999
    %v1008 = vsel %vm1004, %v999, %v1001
    %v1009 = vsel %vm1004, %v1001, %v1003
    %v1011 = vsel %vm71, %v964, 0
    %v1014 = vsel %vm75, %v1005, 0
    %v1017 = vsel %vm75, %v1006, 0
    %v1020 = vsel %vm75, %v1007, 0
    %v1023 = vsel %vm75, %v1008, 0
    %v1026 = vsel %vm75, %v1009, 0
    %1028 = vmatprep.subr.bf16.mxu0 %v1017
    %1029 = vmatpush1.bf16.msra.mxu0 %v1014
    %1030 = vmatprep.subr.bf16.mxu0 0
    %1031 = vmatpush1.bf16.msra.mxu0 0
    %1032 = vmatprep.subr.bf16.mxu0 0
    %1033 = vmatpush1.bf16.msra.mxu0 0
    %1034 = vmatprep.subr.bf16.mxu0 0
    %1035 = vmatpush1.bf16.msra.mxu0 0
    %1036 = vmatprep.subr.bf16.mxu0 0
    %1037 = vmatpush1.bf16.msra.mxu0 0
    %1038 = vmatprep.subr.bf16.mxu0 0
    %1039 = vmatpush1.bf16.msra.mxu0 0
    %1040 = vmatprep.subr.bf16.mxu0 0
    %1041 = vmatpush1.bf16.msra.mxu0 0
    %1042 = vmatprep.subr.bf16.mxu0 0
    %1043 = vmatpush1.bf16.msra.mxu0 0
    %1044 = vmatprep.subr.bf16.mxu0 0
    %1045 = vmatpush1.bf16.msra.mxu0 0
    %1046 = vmatprep.subr.bf16.mxu0 0
    %1047 = vmatpush1.bf16.msra.mxu0 0
    %1048 = vmatprep.subr.bf16.mxu0 0
    %1049 = vmatpush1.bf16.msra.mxu0 0
    %1050 = vmatprep.subr.bf16.mxu0 0
    %1051 = vmatpush1.bf16.msra.mxu0 0
    %1052 = vmatprep.subr.bf16.mxu0 0
    %1053 = vmatpush1.bf16.msra.mxu0 0
    %1054 = vmatprep.subr.bf16.mxu0 0
    %1055 = vmatpush1.bf16.msra.mxu0 0
    %1056 = vmatprep.subr.bf16.mxu0 0
    %1057 = vmatpush1.bf16.msra.mxu0 0
    %1058 = vmatprep.subr.bf16.mxu0 0
    %1059 = vmatpush1.bf16.msra.mxu0 0
    %1060 = vmatprep.mubr.bf16.mxu0 0
    %1061 = vmatmul.mubr.bf16.gmra.mrb[0].mxu0 %v1011
    %v1062 = vpop.f32.mrb[0].mxu0
    %v1063 = vadd.f32 0.0, %v1062
    %v1064 = vpop.f32.mrb[0].mxu0
    %v1065 = vadd.f32 0.0, %v1064
    %v1066 = vpop.f32.mrb[0].mxu0
    %v1067 = vpop.f32.mrb[0].mxu0
    %1068 = vdwg.mxu0
    %1069 = vmatprep.subr.bf16.mxu0 %v1023
    %1070 = vmatpush1.bf16.msra.mxu0 %v1020
    %1071 = vmatprep.subr.bf16.mxu0 0
    %1072 = vmatpush1.bf16.msra.mxu0 0
    %1073 = vmatprep.subr.bf16.mxu0 0
    %1074 = vmatpush1.bf16.msra.mxu0 0
    %1075 = vmatprep.subr.bf16.mxu0 0
    %1076 = vmatpush1.bf16.msra.mxu0 0
    %1077 = vmatprep.subr.bf16.mxu0 0
    %1078 = vmatpush1.bf16.msra.mxu0 0
    %1079 = vmatprep.subr.bf16.mxu0 0
    %1080 = vmatpush1.bf16.msra.mxu0 0
    %1081 = vmatprep.subr.bf16.mxu0 0
    %1082 = vmatpush1.bf16.msra.mxu0 0
    %1083 = vmatprep.subr.bf16.mxu0 0
    %1084 = vmatpush1.bf16.msra.mxu0 0
    %1085 = vmatprep.subr.bf16.mxu0 0
    %1086 = vmatpush1.bf16.msra.mxu0 0
    %1087 = vmatprep.subr.bf16.mxu0 0
    %1088 = vmatpush1.bf16.msra.mxu0 0
    %1089 = vmatprep.subr.bf16.mxu0 0
    %1090 = vmatpush1.bf16.msra.mxu0 0
    %1091 = vmatprep.subr.bf16.mxu0 0
    %1092 = vmatpush1.bf16.msra.mxu0 0
    %1093 = vmatprep.subr.bf16.mxu0 0
    %1094 = vmatpush1.bf16.msra.mxu0 0
    %1095 = vmatprep.subr.bf16.mxu0 0
    %1096 = vmatpush1.bf16.msra.mxu0 0
    %1097 = vmatprep.subr.bf16.mxu0 0
    %1098 = vmatpush1.bf16.msra.mxu0 0
    %1099 = vmatprep.subr.bf16.mxu0 0
    %1100 = vmatpush1.bf16.msra.mxu0 0
    %1101 = vmatprep.mubr.bf16.mxu0 0
    %1102 = vmatmul.mubr.bf16.gmra.mrb[0].mxu0 %v1011
    %v1103 = vpop.f32.mrb[0].mxu0
    %v1104 = vadd.f32 0.0, %v1103
    %v1105 = vpop.f32.mrb[0].mxu0
    %v1106 = vadd.f32 0.0, %v1105
    %v1107 = vpop.f32.mrb[0].mxu0
    %v1108 = vpop.f32.mrb[0].mxu0
    %1109 = vdwg.mxu0
    %1110 = vmatprep.subr.bf16.mxu0 0
    %1111 = vmatpush1.bf16.msra.mxu0 %v1026
    %1112 = vmatprep.subr.bf16.mxu0 0
    %1113 = vmatpush1.bf16.msra.mxu0 0
    %1114 = vmatprep.subr.bf16.mxu0 0
    %1115 = vmatpush1.bf16.msra.mxu0 0
    %1116 = vmatprep.subr.bf16.mxu0 0
    %1117 = vmatpush1.bf16.msra.mxu0 0
    %1118 = vmatprep.subr.bf16.mxu0 0
    %1119 = vmatpush1.bf16.msra.mxu0 0
    %1120 = vmatprep.subr.bf16.mxu0 0
    %1121 = vmatpush1.bf16.msra.mxu0 0
    %1122 = vmatprep.subr.bf16.mxu0 0
    %1123 = vmatpush1.bf16.msra.mxu0 0
    %1124 = vmatprep.subr.bf16.mxu0 0
    %1125 = vmatpush1.bf16.msra.mxu0 0
    %1126 = vmatprep.subr.bf16.mxu0 0
    %1127 = vmatpush1.bf16.msra.mxu0 0
    %1128 = vmatprep.subr.bf16.mxu0 0
    %1129 = vmatpush1.bf16.msra.mxu0 0
    %1130 = vmatprep.subr.bf16.mxu0 0
    %1131 = vmatpush1.bf16.msra.mxu0 0
    %1132 = vmatprep.subr.bf16.mxu0 0
    %1133 = vmatpush1.bf16.msra.mxu0 0
    %1134 = vmatprep.subr.bf16.mxu0 0
    %1135 = vmatpush1.bf16.msra.mxu0 0
    %1136 = vmatprep.subr.bf16.mxu0 0
    %1137 = vmatpush1.bf16.msra.mxu0 0
    %1138 = vmatprep.subr.bf16.mxu0 0
    %1139 = vmatpush1.bf16.msra.mxu0 0
    %1140 = vmatprep.subr.bf16.mxu0 0
    %1141 = vmatpush1.bf16.msra.mxu0 0
    %1142 = vmatprep.mubr.bf16.mxu0 0
    %1143 = vmatmul.mubr.bf16.gmra.mrb[0].mxu0 %v1011
    %v1144 = vpop.f32.mrb[0].mxu0
    %v1145 = vadd.f32 0.0, %v1144
    %v1146 = vpop.f32.mrb[0].mxu0
    %v1147 = vpop.f32.mrb[0].mxu0
    %v1148 = vpop.f32.mrb[0].mxu0
    %1149 = vdwg.mxu0
    %v1150 = vadd.f32 %v956, %v1063
    %v1151 = vadd.f32 %v957, %v1065
    %v1152 = vadd.f32 %v958, %v1104
    %v1153 = vadd.f32 %v959, %v1106
    %v1154 = vadd.f32 %v960, %v1145
    %v1155 = vld [vmem:[%s0] sm:$0xff]
    %v1156 = vld [vmem:[%s0 + $0x8] sm:$0xf]
    %s1157 = scalar_lea.vmem %s1, 24
    %v1158 = vld [vmem:[%s1157] sm:$0xf]
    %v1161 = vcombine.high %v1155, %v1155
    %v1163 = vunpack.c.l.s4 1983009808
    %v1164 = vunpack.c.0.s8 %v1163
    %v1165 = vlaneseq
    %v1166 = vshrl.u32 %v1165, 7
    %v1167 = vsub.s32 %v1164, %v1166
    %v1168 = vrot.slane %v1155, %v1167
    %v1170 = vunpack.c.l.s4 1983009808
    %v1171 = vunpack.c.0.s8 %v1170
    %v1172 = vlaneseq
    %v1173 = vshrl.u32 %v1172, 7
    %v1174 = vsub.s32 %v1171, %v1173
    %v1175 = vrot.slane %v1161, %v1174
    %v1176 = vcombine.high %v1168, %v1168
    %v1177 = vcombine.high %v1175, %v1175
    %v1179 = vunpack.c.l.s4 1983009808
    %v1180 = vunpack.c.0.s8 %v1179
    %v1181 = vlaneseq
    %v1182 = vshrl.u32 %v1181, 7
    %v1183 = vsub.s32 %v1180, %v1182
    %v1184 = vrot.slane %v1156, %v1183
    %v1185 = vcombine.high %v1184, %v1184
    %1186 = vrot.lane.b32.xlu0 %v1168, 92
    %v1187 = vpop.permute.xlu0 %1186
    %1188 = vrot.lane.b32.xlu0 %v1176, 92
    %v1189 = vpop.permute.xlu0 %1188
    %1190 = vrot.lane.b32.xlu0 %v1175, 92
    %v1191 = vpop.permute.xlu0 %1190
    %1192 = vrot.lane.b32.xlu0 %v1177, 92
    %v1193 = vpop.permute.xlu0 %1192
    %1194 = vrot.lane.b32.xlu0 %v1184, 92
    %v1195 = vpop.permute.xlu0 %1194
    %1196 = vrot.lane.b32.xlu0 %v1185, 92
    %v1197 = vpop.permute.xlu0 %1196
    %vm1198 = vcmask 752640
    %v1199 = vsel %vm1198, %v1187, %v1189
    %v1200 = vsel %vm1198, %v1189, %v1191
    %v1201 = vsel %vm1198, %v1191, %v1193
    %v1202 = vsel %vm1198, %v1193, %v1195
    %v1203 = vsel %vm1198, %v1195, %v1197
    %v1205 = vsel %vm71, %v1158, 0
    %v1208 = vsel %vm75, %v1199, 0
    %v1211 = vsel %vm75, %v1200, 0
    %v1214 = vsel %vm75, %v1201, 0
    %v1217 = vsel %vm75, %v1202, 0
    %v1220 = vsel %vm75, %v1203, 0
    %1222 = vmatprep.subr.bf16.mxu0 %v1211
    %1223 = vmatpush1.bf16.msra.mxu0 %v1208
    %1224 = vmatprep.subr.bf16.mxu0 0
    %1225 = vmatpush1.bf16.msra.mxu0 0
    %1226 = vmatprep.subr.bf16.mxu0 0
    %1227 = vmatpush1.bf16.msra.mxu0 0
    %1228 = vmatprep.subr.bf16.mxu0 0
    %1229 = vmatpush1.bf16.msra.mxu0 0
    %1230 = vmatprep.subr.bf16.mxu0 0
    %1231 = vmatpush1.bf16.msra.mxu0 0
    %1232 = vmatprep.subr.bf16.mxu0 0
    %1233 = vmatpush1.bf16.msra.mxu0 0
    %1234 = vmatprep.subr.bf16.mxu0 0
    %1235 = vmatpush1.bf16.msra.mxu0 0
    %1236 = vmatprep.subr.bf16.mxu0 0
    %1237 = vmatpush1.bf16.msra.mxu0 0
    %1238 = vmatprep.subr.bf16.mxu0 0
    %1239 = vmatpush1.bf16.msra.mxu0 0
    %1240 = vmatprep.subr.bf16.mxu0 0
    %1241 = vmatpush1.bf16.msra.mxu0 0
    %1242 = vmatprep.subr.bf16.mxu0 0
    %1243 = vmatpush1.bf16.msra.mxu0 0
    %1244 = vmatprep.subr.bf16.mxu0 0
    %1245 = vmatpush1.bf16.msra.mxu0 0
    %1246 = vmatprep.subr.bf16.mxu0 0
    %1247 = vmatpush1.bf16.msra.mxu0 0
    %1248 = vmatprep.subr.bf16.mxu0 0
    %1249 = vmatpush1.bf16.msra.mxu0 0
    %1250 = vmatprep.subr.bf16.mxu0 0
    %1251 = vmatpush1.bf16.msra.mxu0 0
    %1252 = vmatprep.subr.bf16.mxu0 0
    %1253 = vmatpush1.bf16.msra.mxu0 0
    %1254 = vmatprep.mubr.bf16.mxu0 0
    %1255 = vmatmul.mubr.bf16.gmra.mrb[0].mxu0 %v1205
    %v1256 = vpop.f32.mrb[0].mxu0
    %v1257 = vadd.f32 0.0, %v1256
    %v1258 = vpop.f32.mrb[0].mxu0
    %v1259 = vadd.f32 0.0, %v1258
    %v1260 = vpop.f32.mrb[0].mxu0
    %v1261 = vpop.f32.mrb[0].mxu0
    %1262 = vdwg.mxu0
    %1263 = vmatprep.subr.bf16.mxu0 %v1217
    %1264 = vmatpush1.bf16.msra.mxu0 %v1214
    %1265 = vmatprep.subr.bf16.mxu0 0
    %1266 = vmatpush1.bf16.msra.mxu0 0
    %1267 = vmatprep.subr.bf16.mxu0 0
    %1268 = vmatpush1.bf16.msra.mxu0 0
    %1269 = vmatprep.subr.bf16.mxu0 0
    %1270 = vmatpush1.bf16.msra.mxu0 0
    %1271 = vmatprep.subr.bf16.mxu0 0
    %1272 = vmatpush1.bf16.msra.mxu0 0
    %1273 = vmatprep.subr.bf16.mxu0 0
    %1274 = vmatpush1.bf16.msra.mxu0 0
    %1275 = vmatprep.subr.bf16.mxu0 0
    %1276 = vmatpush1.bf16.msra.mxu0 0
    %1277 = vmatprep.subr.bf16.mxu0 0
    %1278 = vmatpush1.bf16.msra.mxu0 0
    %1279 = vmatprep.subr.bf16.mxu0 0
    %1280 = vmatpush1.bf16.msra.mxu0 0
    %1281 = vmatprep.subr.bf16.mxu0 0
    %1282 = vmatpush1.bf16.msra.mxu0 0
    %1283 = vmatprep.subr.bf16.mxu0 0
    %1284 = vmatpush1.bf16.msra.mxu0 0
    %1285 = vmatprep.subr.bf16.mxu0 0
    %1286 = vmatpush1.bf16.msra.mxu0 0
    %1287 = vmatprep.subr.bf16.mxu0 0
    %1288 = vmatpush1.bf16.msra.mxu0 0
    %1289 = vmatprep.subr.bf16.mxu0 0
    %1290 = vmatpush1.bf16.msra.mxu0 0
    %1291 = vmatprep.subr.bf16.mxu0 0
    %1292 = vmatpush1.bf16.msra.mxu0 0
    %1293 = vmatprep.subr.bf16.mxu0 0
    %1294 = vmatpush1.bf16.msra.mxu0 0
    %1295 = vmatprep.mubr.bf16.mxu0 0
    %1296 = vmatmul.mubr.bf16.gmra.mrb[0].mxu0 %v1205
    %v1297 = vpop.f32.mrb[0].mxu0
    %v1298 = vadd.f32 0.0, %v1297
    %v1299 = vpop.f32.mrb[0].mxu0
    %v1300 = vadd.f32 0.0, %v1299
    %v1301 = vpop.f32.mrb[0].mxu0
    %v1302 = vpop.f32.mrb[0].mxu0
    %1303 = vdwg.mxu0
    %1304 = vmatprep.subr.bf16.mxu0 0
    %1305 = vmatpush1.bf16.msra.mxu0 %v1220
    %1306 = vmatprep.subr.bf16.mxu0 0
    %1307 = vmatpush1.bf16.msra.mxu0 0
    %1308 = vmatprep.subr.bf16.mxu0 0
    %1309 = vmatpush1.bf16.msra.mxu0 0
    %1310 = vmatprep.subr.bf16.mxu0 0
    %1311 = vmatpush1.bf16.msra.mxu0 0
    %1312 = vmatprep.subr.bf16.mxu0 0
    %1313 = vmatpush1.bf16.msra.mxu0 0
    %1314 = vmatprep.subr.bf16.mxu0 0
    %1315 = vmatpush1.bf16.msra.mxu0 0
    %1316 = vmatprep.subr.bf16.mxu0 0
    %1317 = vmatpush1.bf16.msra.mxu0 0
    %1318 = vmatprep.subr.bf16.mxu0 0
    %1319 = vmatpush1.bf16.msra.mxu0 0
    %1320 = vmatprep.subr.bf16.mxu0 0
    %1321 = vmatpush1.bf16.msra.mxu0 0
    %1322 = vmatprep.subr.bf16.mxu0 0
    %1323 = vmatpush1.bf16.msra.mxu0 0
    %1324 = vmatprep.subr.bf16.mxu0 0
    %1325 = vmatpush1.bf16.msra.mxu0 0
    %1326 = vmatprep.subr.bf16.mxu0 0
    %1327 = vmatpush1.bf16.msra.mxu0 0
    %1328 = vmatprep.subr.bf16.mxu0 0
    %1329 = vmatpush1.bf16.msra.mxu0 0
    %1330 = vmatprep.subr.bf16.mxu0 0
    %1331 = vmatpush1.bf16.msra.mxu0 0
    %1332 = vmatprep.subr.bf16.mxu0 0
    %1333 = vmatpush1.bf16.msra.mxu0 0
    %1334 = vmatprep.subr.bf16.mxu0 0
    %1335 = vmatpush1.bf16.msra.mxu0 0
    %1336 = vmatprep.mubr.bf16.mxu0 0
    %1337 = vmatmul.mubr.bf16.gmra.mrb[0].mxu0 %v1205
    %v1338 = vpop.f32.mrb[0].mxu0
    %v1339 = vadd.f32 0.0, %v1338
    %v1340 = vpop.f32.mrb[0].mxu0
    %v1341 = vpop.f32.mrb[0].mxu0
    %v1342 = vpop.f32.mrb[0].mxu0
    %1343 = vdwg.mxu0
    %v1344 = vadd.f32 %v1150, %v1257
    %v1345 = vadd.f32 %v1151, %v1259
    %v1346 = vadd.f32 %v1152, %v1298
    %v1347 = vadd.f32 %v1153, %v1300
    %v1348 = vadd.f32 %v1154, %v1339
    %v1349 = vld [vmem:[%s0] sm:$0xff]
    %v1350 = vld [vmem:[%s0 + $0x8] sm:$0xf]
    %s1351 = scalar_lea.vmem %s1, 28
    %v1352 = vld [vmem:[%s1351] sm:$0xf]
    %v1355 = vcombine.high %v1349, %v1349
    %v1357 = vunpack.c.l.s4 1983009808
    %v1358 = vunpack.c.0.s8 %v1357
    %v1359 = vlaneseq
    %v1360 = vshrl.u32 %v1359, 7
    %v1361 = vsub.s32 %v1358, %v1360
    %v1362 = vrot.slane %v1349, %v1361
    %v1364 = vunpack.c.l.s4 1983009808
    %v1365 = vunpack.c.0.s8 %v1364
    %v1366 = vlaneseq
    %v1367 = vshrl.u32 %v1366, 7
    %v1368 = vsub.s32 %v1365, %v1367
    %v1369 = vrot.slane %v1355, %v1368
    %v1370 = vcombine.high %v1362, %v1362
    %v1371 = vcombine.high %v1369, %v1369
    %v1373 = vunpack.c.l.s4 1983009808
    %v1374 = vunpack.c.0.s8 %v1373
    %v1375 = vlaneseq
    %v1376 = vshrl.u32 %v1375, 7
    %v1377 = vsub.s32 %v1374, %v1376
    %v1378 = vrot.slane %v1350, %v1377
    %v1379 = vcombine.high %v1378, %v1378
    %1380 = vrot.lane.b32.xlu0 %v1362, 91
    %v1381 = vpop.permute.xlu0 %1380
    %1382 = vrot.lane.b32.xlu0 %v1370, 91
    %v1383 = vpop.permute.xlu0 %1382
    %1384 = vrot.lane.b32.xlu0 %v1369, 91
    %v1385 = vpop.permute.xlu0 %1384
    %1386 = vrot.lane.b32.xlu0 %v1371, 91
    %v1387 = vpop.permute.xlu0 %1386
    %1388 = vrot.lane.b32.xlu0 %v1378, 91
    %v1389 = vpop.permute.xlu0 %1388
    %1390 = vrot.lane.b32.xlu0 %v1379, 91
    %v1391 = vpop.permute.xlu0 %1390
    %vm1392 = vcmask 744448
    %v1393 = vsel %vm1392, %v1381, %v1383
    %v1394 = vsel %vm1392, %v1383, %v1385
    %v1395 = vsel %vm1392, %v1385, %v1387
    %v1396 = vsel %vm1392, %v1387, %v1389
    %v1397 = vsel %vm1392, %v1389, %v1391
    %v1399 = vsel %vm71, %v1352, 0
    %v1402 = vsel %vm75, %v1393, 0
    %v1405 = vsel %vm75, %v1394, 0
    %v1408 = vsel %vm75, %v1395, 0
    %v1411 = vsel %vm75, %v1396, 0
    %v1414 = vsel %vm75, %v1397, 0
    %1416 = vmatprep.subr.bf16.mxu0 %v1405
    %1417 = vmatpush1.bf16.msra.mxu0 %v1402
    %1418 = vmatprep.subr.bf16.mxu0 0
    %1419 = vmatpush1.bf16.msra.mxu0 0
    %1420 = vmatprep.subr.bf16.mxu0 0
    %1421 = vmatpush1.bf16.msra.mxu0 0
    %1422 = vmatprep.subr.bf16.mxu0 0
    %1423 = vmatpush1.bf16.msra.mxu0 0
    %1424 = vmatprep.subr.bf16.mxu0 0
    %1425 = vmatpush1.bf16.msra.mxu0 0
    %1426 = vmatprep.subr.bf16.mxu0 0
    %1427 = vmatpush1.bf16.msra.mxu0 0
    %1428 = vmatprep.subr.bf16.mxu0 0
    %1429 = vmatpush1.bf16.msra.mxu0 0
    %1430 = vmatprep.subr.bf16.mxu0 0
    %1431 = vmatpush1.bf16.msra.mxu0 0
    %1432 = vmatprep.subr.bf16.mxu0 0
    %1433 = vmatpush1.bf16.msra.mxu0 0
    %1434 = vmatprep.subr.bf16.mxu0 0
    %1435 = vmatpush1.bf16.msra.mxu0 0
    %1436 = vmatprep.subr.bf16.mxu0 0
    %1437 = vmatpush1.bf16.msra.mxu0 0
    %1438 = vmatprep.subr.bf16.mxu0 0
    %1439 = vmatpush1.bf16.msra.mxu0 0
    %1440 = vmatprep.subr.bf16.mxu0 0
    %1441 = vmatpush1.bf16.msra.mxu0 0
    %1442 = vmatprep.subr.bf16.mxu0 0
    %1443 = vmatpush1.bf16.msra.mxu0 0
    %1444 = vmatprep.subr.bf16.mxu0 0
    %1445 = vmatpush1.bf16.msra.mxu0 0
    %1446 = vmatprep.subr.bf16.mxu0 0
    %1447 = vmatpush1.bf16.msra.mxu0 0
    %1448 = vmatprep.mubr.bf16.mxu0 0
    %1449 = vmatmul.mubr.bf16.gmra.mrb[0].mxu0 %v1399
    %v1450 = vpop.f32.mrb[0].mxu0
    %v1451 = vadd.f32 0.0, %v1450
    %v1452 = vpop.f32.mrb[0].mxu0
    %v1453 = vadd.f32 0.0, %v1452
    %v1454 = vpop.f32.mrb[0].mxu0
    %v1455 = vpop.f32.mrb[0].mxu0
    %1456 = vdwg.mxu0
    %1457 = vmatprep.subr.bf16.mxu0 %v1411
    %1458 = vmatpush1.bf16.msra.mxu0 %v1408
    %1459 = vmatprep.subr.bf16.mxu0 0
    %1460 = vmatpush1.bf16.msra.mxu0 0
    %1461 = vmatprep.subr.bf16.mxu0 0
    %1462 = vmatpush1.bf16.msra.mxu0 0
    %1463 = vmatprep.subr.bf16.mxu0 0
    %1464 = vmatpush1.bf16.msra.mxu0 0
    %1465 = vmatprep.subr.bf16.mxu0 0
    %1466 = vmatpush1.bf16.msra.mxu0 0
    %1467 = vmatprep.subr.bf16.mxu0 0
    %1468 = vmatpush1.bf16.msra.mxu0 0
    %1469 = vmatprep.subr.bf16.mxu0 0
    %1470 = vmatpush1.bf16.msra.mxu0 0
    %1471 = vmatprep.subr.bf16.mxu0 0
    %1472 = vmatpush1.bf16.msra.mxu0 0
    %1473 = vmatprep.subr.bf16.mxu0 0
    %1474 = vmatpush1.bf16.msra.mxu0 0
    %1475 = vmatprep.subr.bf16.mxu0 0
    %1476 = vmatpush1.bf16.msra.mxu0 0
    %1477 = vmatprep.subr.bf16.mxu0 0
    %1478 = vmatpush1.bf16.msra.mxu0 0
    %1479 = vmatprep.subr.bf16.mxu0 0
    %1480 = vmatpush1.bf16.msra.mxu0 0
    %1481 = vmatprep.subr.bf16.mxu0 0
    %1482 = vmatpush1.bf16.msra.mxu0 0
    %1483 = vmatprep.subr.bf16.mxu0 0
    %1484 = vmatpush1.bf16.msra.mxu0 0
    %1485 = vmatprep.subr.bf16.mxu0 0
    %1486 = vmatpush1.bf16.msra.mxu0 0
    %1487 = vmatprep.subr.bf16.mxu0 0
    %1488 = vmatpush1.bf16.msra.mxu0 0
    %1489 = vmatprep.mubr.bf16.mxu0 0
    %1490 = vmatmul.mubr.bf16.gmra.mrb[0].mxu0 %v1399
    %v1491 = vpop.f32.mrb[0].mxu0
    %v1492 = vadd.f32 0.0, %v1491
    %v1493 = vpop.f32.mrb[0].mxu0
    %v1494 = vadd.f32 0.0, %v1493
    %v1495 = vpop.f32.mrb[0].mxu0
    %v1496 = vpop.f32.mrb[0].mxu0
    %1497 = vdwg.mxu0
    %1498 = vmatprep.subr.bf16.mxu0 0
    %1499 = vmatpush1.bf16.msra.mxu0 %v1414
    %1500 = vmatprep.subr.bf16.mxu0 0
    %1501 = vmatpush1.bf16.msra.mxu0 0
    %1502 = vmatprep.subr.bf16.mxu0 0
    %1503 = vmatpush1.bf16.msra.mxu0 0
    %1504 = vmatprep.subr.bf16.mxu0 0
    %1505 = vmatpush1.bf16.msra.mxu0 0
    %1506 = vmatprep.subr.bf16.mxu0 0
    %1507 = vmatpush1.bf16.msra.mxu0 0
    %1508 = vmatprep.subr.bf16.mxu0 0
    %1509 = vmatpush1.bf16.msra.mxu0 0
    %1510 = vmatprep.subr.bf16.mxu0 0
    %1511 = vmatpush1.bf16.msra.mxu0 0
    %1512 = vmatprep.subr.bf16.mxu0 0
    %1513 = vmatpush1.bf16.msra.mxu0 0
    %1514 = vmatprep.subr.bf16.mxu0 0
    %1515 = vmatpush1.bf16.msra.mxu0 0
    %1516 = vmatprep.subr.bf16.mxu0 0
    %1517 = vmatpush1.bf16.msra.mxu0 0
    %1518 = vmatprep.subr.bf16.mxu0 0
    %1519 = vmatpush1.bf16.msra.mxu0 0
    %1520 = vmatprep.subr.bf16.mxu0 0
    %1521 = vmatpush1.bf16.msra.mxu0 0
    %1522 = vmatprep.subr.bf16.mxu0 0
    %1523 = vmatpush1.bf16.msra.mxu0 0
    %1524 = vmatprep.subr.bf16.mxu0 0
    %1525 = vmatpush1.bf16.msra.mxu0 0
    %1526 = vmatprep.subr.bf16.mxu0 0
    %1527 = vmatpush1.bf16.msra.mxu0 0
    %1528 = vmatprep.subr.bf16.mxu0 0
    %1529 = vmatpush1.bf16.msra.mxu0 0
    %1530 = vmatprep.mubr.bf16.mxu0 0
    %1531 = vmatmul.mubr.bf16.gmra.mrb[0].mxu0 %v1399
    %v1532 = vpop.f32.mrb[0].mxu0
    %v1533 = vadd.f32 0.0, %v1532
    %v1534 = vpop.f32.mrb[0].mxu0
    %v1535 = vpop.f32.mrb[0].mxu0
    %v1536 = vpop.f32.mrb[0].mxu0
    %1537 = vdwg.mxu0
    %v1538 = vadd.f32 %v1344, %v1451
    %v1539 = vadd.f32 %v1345, %v1453
    %v1540 = vadd.f32 %v1346, %v1492
    %v1541 = vadd.f32 %v1347, %v1494
    %v1542 = vadd.f32 %v1348, %v1533
    %v1543 = vld [vmem:[%s0] sm:$0xff]
    %v1544 = vld [vmem:[%s0 + $0x8] sm:$0xf]
    %s1545 = scalar_lea.vmem %s1, 32
    %v1546 = vld [vmem:[%s1545] sm:$0xf]
    %v1549 = vcombine.high %v1543, %v1543
    %v1551 = vunpack.c.l.s4 1983009808
    %v1552 = vunpack.c.0.s8 %v1551
    %v1553 = vlaneseq
    %v1554 = vshrl.u32 %v1553, 7
    %v1555 = vsub.s32 %v1552, %v1554
    %v1556 = vrot.slane %v1543, %v1555
    %v1558 = vunpack.c.l.s4 1983009808
    %v1559 = vunpack.c.0.s8 %v1558
    %v1560 = vlaneseq
    %v1561 = vshrl.u32 %v1560, 7
    %v1562 = vsub.s32 %v1559, %v1561
    %v1563 = vrot.slane %v1549, %v1562
    %v1564 = vcombine.high %v1556, %v1556
    %v1565 = vcombine.high %v1563, %v1563
    %v1567 = vunpack.c.l.s4 1983009808
    %v1568 = vunpack.c.0.s8 %v1567
    %v1569 = vlaneseq
    %v1570 = vshrl.u32 %v1569, 7
    %v1571 = vsub.s32 %v1568, %v1570
    %v1572 = vrot.slane %v1544, %v1571
    %v1573 = vcombine.high %v1572, %v1572
    %1574 = vrot.lane.b32.xlu0 %v1556, 90
    %v1575 = vpop.permute.xlu0 %1574
    %1576 = vrot.lane.b32.xlu0 %v1564, 90
    %v1577 = vpop.permute.xlu0 %1576
    %1578 = vrot.lane.b32.xlu0 %v1563, 90
    %v1579 = vpop.permute.xlu0 %1578
    %1580 = vrot.lane.b32.xlu0 %v1565, 90
    %v1581 = vpop.permute.xlu0 %1580
    %1582 = vrot.lane.b32.xlu0 %v1572, 90
    %v1583 = vpop.permute.xlu0 %1582
    %1584 = vrot.lane.b32.xlu0 %v1573, 90
    %v1585 = vpop.permute.xlu0 %1584
    %vm1586 = vcmask 736256
    %v1587 = vsel %vm1586, %v1575, %v1577
    %v1588 = vsel %vm1586, %v1577, %v1579
    %v1589 = vsel %vm1586, %v1579, %v1581
    %v1590 = vsel %vm1586, %v1581, %v1583
    %v1591 = vsel %vm1586, %v1583, %v1585
    %v1593 = vsel %vm71, %v1546, 0
    %v1596 = vsel %vm75, %v1587, 0
    %v1599 = vsel %vm75, %v1588, 0
    %v1602 = vsel %vm75, %v1589, 0
    %v1605 = vsel %vm75, %v1590, 0
    %v1608 = vsel %vm75, %v1591, 0
    %1610 = vmatprep.subr.bf16.mxu0 %v1599
    %1611 = vmatpush1.bf16.msra.mxu0 %v1596
    %1612 = vmatprep.subr.bf16.mxu0 0
    %1613 = vmatpush1.bf16.msra.mxu0 0
    %1614 = vmatprep.subr.bf16.mxu0 0
    %1615 = vmatpush1.bf16.msra.mxu0 0
    %1616 = vmatprep.subr.bf16.mxu0 0
    %1617 = vmatpush1.bf16.msra.mxu0 0
    %1618 = vmatprep.subr.bf16.mxu0 0
    %1619 = vmatpush1.bf16.msra.mxu0 0
    %1620 = vmatprep.subr.bf16.mxu0 0
    %1621 = vmatpush1.bf16.msra.mxu0 0
    %1622 = vmatprep.subr.bf16.mxu0 0
    %1623 = vmatpush1.bf16.msra.mxu0 0
    %1624 = vmatprep.subr.bf16.mxu0 0
    %1625 = vmatpush1.bf16.msra.mxu0 0
    %1626 = vmatprep.subr.bf16.mxu0 0
    %1627 = vmatpush1.bf16.msra.mxu0 0
    %1628 = vmatprep.subr.bf16.mxu0 0
    %1629 = vmatpush1.bf16.msra.mxu0 0
    %1630 = vmatprep.subr.bf16.mxu0 0
    %1631 = vmatpush1.bf16.msra.mxu0 0
    %1632 = vmatprep.subr.bf16.mxu0 0
    %1633 = vmatpush1.bf16.msra.mxu0 0
    %1634 = vmatprep.subr.bf16.mxu0 0
    %1635 = vmatpush1.bf16.msra.mxu0 0
    %1636 = vmatprep.subr.bf16.mxu0 0
    %1637 = vmatpush1.bf16.msra.mxu0 0
    %1638 = vmatprep.subr.bf16.mxu0 0
    %1639 = vmatpush1.bf16.msra.mxu0 0
    %1640 = vmatprep.subr.bf16.mxu0 0
    %1641 = vmatpush1.bf16.msra.mxu0 0
    %1642 = vmatprep.mubr.bf16.mxu0 0
    %1643 = vmatmul.mubr.bf16.gmra.mrb[0].mxu0 %v1593
    %v1644 = vpop.f32.mrb[0].mxu0
    %v1645 = vadd.f32 0.0, %v1644
    %v1646 = vpop.f32.mrb[0].mxu0
    %v1647 = vadd.f32 0.0, %v1646
    %v1648 = vpop.f32.mrb[0].mxu0
    %v1649 = vpop.f32.mrb[0].mxu0
    %1650 = vdwg.mxu0
    %1651 = vmatprep.subr.bf16.mxu0 %v1605
    %1652 = vmatpush1.bf16.msra.mxu0 %v1602
    %1653 = vmatprep.subr.bf16.mxu0 0
    %1654 = vmatpush1.bf16.msra.mxu0 0
    %1655 = vmatprep.subr.bf16.mxu0 0
    %1656 = vmatpush1.bf16.msra.mxu0 0
    %1657 = vmatprep.subr.bf16.mxu0 0
    %1658 = vmatpush1.bf16.msra.mxu0 0
    %1659 = vmatprep.subr.bf16.mxu0 0
    %1660 = vmatpush1.bf16.msra.mxu0 0
    %1661 = vmatprep.subr.bf16.mxu0 0
    %1662 = vmatpush1.bf16.msra.mxu0 0
    %1663 = vmatprep.subr.bf16.mxu0 0
    %1664 = vmatpush1.bf16.msra.mxu0 0
    %1665 = vmatprep.subr.bf16.mxu0 0
    %1666 = vmatpush1.bf16.msra.mxu0 0
    %1667 = vmatprep.subr.bf16.mxu0 0
    %1668 = vmatpush1.bf16.msra.mxu0 0
    %1669 = vmatprep.subr.bf16.mxu0 0
    %1670 = vmatpush1.bf16.msra.mxu0 0
    %1671 = vmatprep.subr.bf16.mxu0 0
    %1672 = vmatpush1.bf16.msra.mxu0 0
    %1673 = vmatprep.subr.bf16.mxu0 0
    %1674 = vmatpush1.bf16.msra.mxu0 0
    %1675 = vmatprep.subr.bf16.mxu0 0
    %1676 = vmatpush1.bf16.msra.mxu0 0
    %1677 = vmatprep.subr.bf16.mxu0 0
    %1678 = vmatpush1.bf16.msra.mxu0 0
    %1679 = vmatprep.subr.bf16.mxu0 0
    %1680 = vmatpush1.bf16.msra.mxu0 0
    %1681 = vmatprep.subr.bf16.mxu0 0
    %1682 = vmatpush1.bf16.msra.mxu0 0
    %1683 = vmatprep.mubr.bf16.mxu0 0
    %1684 = vmatmul.mubr.bf16.gmra.mrb[0].mxu0 %v1593
    %v1685 = vpop.f32.mrb[0].mxu0
    %v1686 = vadd.f32 0.0, %v1685
    %v1687 = vpop.f32.mrb[0].mxu0
    %v1688 = vadd.f32 0.0, %v1687
    %v1689 = vpop.f32.mrb[0].mxu0
    %v1690 = vpop.f32.mrb[0].mxu0
    %1691 = vdwg.mxu0
    %1692 = vmatprep.subr.bf16.mxu0 0
    %1693 = vmatpush1.bf16.msra.mxu0 %v1608
    %1694 = vmatprep.subr.bf16.mxu0 0
    %1695 = vmatpush1.bf16.msra.mxu0 0
    %1696 = vmatprep.subr.bf16.mxu0 0
    %1697 = vmatpush1.bf16.msra.mxu0 0
    %1698 = vmatprep.subr.bf16.mxu0 0
    %1699 = vmatpush1.bf16.msra.mxu0 0
    %1700 = vmatprep.subr.bf16.mxu0 0
    %1701 = vmatpush1.bf16.msra.mxu0 0
    %1702 = vmatprep.subr.bf16.mxu0 0
    %1703 = vmatpush1.bf16.msra.mxu0 0
    %1704 = vmatprep.subr.bf16.mxu0 0
    %1705 = vmatpush1.bf16.msra.mxu0 0
    %1706 = vmatprep.subr.bf16.mxu0 0
    %1707 = vmatpush1.bf16.msra.mxu0 0
    %1708 = vmatprep.subr.bf16.mxu0 0
    %1709 = vmatpush1.bf16.msra.mxu0 0
    %1710 = vmatprep.subr.bf16.mxu0 0
    %1711 = vmatpush1.bf16.msra.mxu0 0
    %1712 = vmatprep.subr.bf16.mxu0 0
    %1713 = vmatpush1.bf16.msra.mxu0 0
    %1714 = vmatprep.subr.bf16.mxu0 0
    %1715 = vmatpush1.bf16.msra.mxu0 0
    %1716 = vmatprep.subr.bf16.mxu0 0
    %1717 = vmatpush1.bf16.msra.mxu0 0
    %1718 = vmatprep.subr.bf16.mxu0 0
    %1719 = vmatpush1.bf16.msra.mxu0 0
    %1720 = vmatprep.subr.bf16.mxu0 0
    %1721 = vmatpush1.bf16.msra.mxu0 0
    %1722 = vmatprep.subr.bf16.mxu0 0
    %1723 = vmatpush1.bf16.msra.mxu0 0
    %1724 = vmatprep.mubr.bf16.mxu0 0
    %1725 = vmatmul.mubr.bf16.gmra.mrb[0].mxu0 %v1593
    %v1726 = vpop.f32.mrb[0].mxu0
    %v1727 = vadd.f32 0.0, %v1726
    %v1728 = vpop.f32.mrb[0].mxu0
    %v1729 = vpop.f32.mrb[0].mxu0
    %v1730 = vpop.f32.mrb[0].mxu0
    %1731 = vdwg.mxu0
    %v1732 = vadd.f32 %v1538, %v1645
    %v1733 = vadd.f32 %v1539, %v1647
    %v1734 = vadd.f32 %v1540, %v1686
    %v1735 = vadd.f32 %v1541, %v1688
    %v1736 = vadd.f32 %v1542, %v1727
    %v1737 = vld [vmem:[%s3] sm:$0x1f]
    %v1739 = vlaneseq
    %v1740 = vshrl.u32 %v1739, 7
    %v1741 = vsub.s32 0, %v1740
    %v1742 = vrot.slane %v1737, %v1741
    %v1743 = vlaneseq
    %v1744 = vshrl.u32 %v1743, 7
    %v1745 = vsub.s32 1, %v1744
    %v1746 = vrot.slane %v1737, %v1745
    %v1747 = vlaneseq
    %v1748 = vshrl.u32 %v1747, 7
    %v1749 = vsub.s32 2, %v1748
    %v1750 = vrot.slane %v1737, %v1749
    %v1751 = vlaneseq
    %v1752 = vshrl.u32 %v1751, 7
    %v1753 = vsub.s32 3, %v1752
    %v1754 = vrot.slane %v1737, %v1753
    %v1755 = vlaneseq
    %v1756 = vshrl.u32 %v1755, 7
    %v1757 = vsub.s32 4, %v1756
    %v1758 = vrot.slane %v1737, %v1757
    %v1764 = vmul.f32 %v1732, %v1742
    %v1765 = vmul.f32 %v1733, %v1746
    %v1766 = vmul.f32 %v1734, %v1750
    %v1767 = vmul.f32 %v1735, %v1754
    %v1768 = vmul.f32 %v1736, %v1758
    %v1769 = vadd.f32 %v1764, %v1765
    %v1770 = vadd.f32 %v1769, %v1766
    %v1771 = vadd.f32 %v1770, %v1767
    %v1772 = vadd.f32 %v1771, %v1768
    %1773 = vadd.xlane.f32.xlu0 %v1772
    %v1774 = vpop.xlane.xlu0 %1773
    %v1775 = vmul.f32 %v1774, 0.001953125
    %v1776 = vsub.f32 %v1732, %v1775
    %v1777 = vsub.f32 %v1733, %v1775
    %v1778 = vsub.f32 %v1734, %v1775
    %v1779 = vsub.f32 %v1735, %v1775
    %v1780 = vsub.f32 %v1736, %v1775
    %v1781 = vmul.f32 %v1776, %v1742
    %v1782 = vmul.f32 %v1777, %v1746
    %v1783 = vmul.f32 %v1778, %v1750
    %v1784 = vmul.f32 %v1779, %v1754
    %v1785 = vmul.f32 %v1780, %v1758
    %v1786 = vmul.f32 %v1781, %v1781
    %v1787 = vmul.f32 %v1782, %v1782
    %v1788 = vmul.f32 %v1783, %v1783
    %v1789 = vmul.f32 %v1784, %v1784
    %v1790 = vmul.f32 %v1785, %v1785
    %v1791 = vadd.f32 %v1786, %v1787
    %v1792 = vadd.f32 %v1791, %v1788
    %v1793 = vadd.f32 %v1792, %v1789
    %v1794 = vadd.f32 %v1793, %v1790
    %1795 = vadd.xlane.f32.xlu0 %v1794
    %v1796 = vpop.xlane.xlu0 %1795
    %v1797 = vmul.f32 %v1796, 0.001953125
    %v1798 = vld [vmem:[%s2] sm:$0xff]
    %v1799 = vadd.f32 %v1797, 1e-05
    %v1800 = vrsqrt.pop %v1799
    %v1801 = vmul.f32 %v1798, %v1800
    %v1802 = vmul.f32 %v1775, %v1801
    %1804 = vrot.lane.b32.xlu0 %v1802, 1
    %v1805 = vpop.permute.xlu0 %1804
    %v1807 = vsub.f32 %v1798, %v1805
    %1809 = vset.pattern.permute.xlu0 0
    %1810 = vperm.xlu0 %1809, %v1801
    %v1811 = vpop.permute.xlu0 %1810
    %v1813 = vmul.f32 %v1732, %v1811
    %v1814 = vmul.f32 %v1733, %v1811
    %v1815 = vmul.f32 %v1734, %v1811
    %v1816 = vmul.f32 %v1735, %v1811
    %v1817 = vmul.f32 %v1736, %v1811
    %1819 = vset.pattern.permute.xlu0 1
    %1820 = vperm.xlu0 %1819, %v1807
    %v1821 = vpop.permute.xlu0 %1820
    %v1823 = vadd.f32 %v1813, %v1821
    %v1824 = vadd.f32 %v1814, %v1821
    %v1825 = vadd.f32 %v1815, %v1821
    %v1826 = vadd.f32 %v1816, %v1821
    %v1827 = vadd.f32 %v1817, %v1821
    %v1828 = vmax.f32 %v1823, 0.0
    %v1829 = vmax.f32 %v1824, 0.0
    %v1830 = vmax.f32 %v1825, 0.0
    %v1831 = vmax.f32 %v1826, 0.0
    %v1832 = vmax.f32 %v1827, 0.0
    %1833 = vst [vmem:[#allocation2] sm:$0xff] %v1828
    %1834 = vst [vmem:[#allocation2 + $0x8] sm:$0xff] %v1829
    %1835 = vst [vmem:[#allocation2 + $0x10] sm:$0xff] %v1830
    %1836 = vst [vmem:[#allocation2 + $0x18] sm:$0xff] %v1831
    %1837 = vst [vmem:[#allocation2 + $0x20] sm:$0xff] %v1832
    // Predicated region
    $region18: #{tpu_custom_call.1} parent=1 // pred_check
      _
    $region19: #{tpu_custom_call.1} parent=1 // pred_check_branch
      %1839 = sbr.rel (0) target = $region21
    $region20: #{tpu_custom_call.1} parent=1 // pred_region
      %s1841 = ssub.s32 640, 640
      %1842 = vsyncadd [#allocation3], %s1841
      %s1844 = sshll.u32 [#allocation2], 4
      %s1845 = int_to_ptr.vmem [resolvable:$true] %s1844
      %1847 = dma.vmem_to_hbm [thread:$0]  %s1845, 640, %s4, [#allocation3]
    $region21: #{tpu_custom_call.1} parent=1 // pred_fallthru
      _
    // Predicated region
    $region22: #{tpu_custom_call.1} parent=1 // pred_check
      _
    $region23: #{tpu_custom_call.1} parent=1 // pred_check_branch
      %1849 = sbr.rel (0) target = $region25
    $region24: #{tpu_custom_call.1} parent=1 // pred_region
      %1850 = dma.done [#allocation3], 640
    $region25: #{tpu_custom_call.1} parent=1 // pred_fallthru
      _
    %1851 = vsyncpa [#allocation3], 1

</llo_original>
